<compile_context>
chip_gen: v6e
topology: v6e:2x2x1
jax: 0.10.0
libtpu: 0.0.40
codegen_flags: <defaults>
</compile_context>

<pallas_src>
import jax
import jax.numpy as jnp
from jax.experimental import pallas as pl
from jax.experimental.pallas import tpu as pltpu

GATE_PAD = 128  # each gate padded to one full 128-lane vreg group


def encoder_gru_kernel(tok_ref, emb_ref, wih_ref, whh_ref, bx_ref, bhn_ref, out_ref):
    """Embedding + input projection + full GRU recurrence, one invocation.

    tok_ref : (T*B, 1) int32   tokens, seq-major flattened (row t*B + b)
    emb_ref : (V, H)   f32     embedding table
    wih_ref : (H, 3*128) f32   input weights, x@W form, gate g in lanes [128g, 128g+H)
    whh_ref : (128, 3*128) f32 hidden weights, rows [H:128] zero, same lane packing
    bx_ref  : (1, 3*128) f32   b_ir+b_hr | b_iz+b_hz | b_in   (gate-padded lanes)
    bhn_ref : (1, 128)   f32   b_hn in lanes [0:H]
    out_ref : (B, T, H)  f32   batch-first per-timestep hidden states
    """
    TB = tok_ref.shape[0]
    V, H = emb_ref.shape
    B, T, _ = out_ref.shape
    GP = GATE_PAD

    # ---------------- Prologue (off the serial chain) ----------------
    # Embedding gather as a one-hot matmul (exact; avoids in-kernel dynamic gather),
    # then ALL input-side gate projections for ALL timesteps in one MXU pass,
    # with the (folded) input-side biases added once.
    tok = tok_ref[...]                                                   # (T*B, 1)
    vids = jax.lax.broadcasted_iota(jnp.int32, (TB, V), 1)               # (T*B, V)
    onehot = jnp.where(tok == vids, 1.0, 0.0).astype(jnp.float32)        # (T*B, V)
    embedded = jnp.dot(onehot, emb_ref[...],
                       preferred_element_type=jnp.float32)               # (T*B, H)
    # TODO(synk): training-mode dropout (p=0.1) on `embedded` omitted — eval mode is identity.
    x_proj = jnp.dot(embedded, wih_ref[...],
                     preferred_element_type=jnp.float32) + bx_ref[...]   # (T*B, 3*128)

    # Hoist invariant loads / broadcasts above the loop (JAX does not CSE these).
    whh = whh_ref[...]                                                   # (128, 3*128)
    bhn = jnp.broadcast_to(bhn_ref[...], (B, GP))                        # (B, 128), once

    # ---------------- Serial recurrence (fully unrolled, static indices) ----------------
    # h carried padded to 128 lanes; real state in lanes [0:H], pad lanes stay 0
    # (whh rows [H:128] are zero, so pad lanes can never pollute gh).
    h = jnp.zeros((B, GP), jnp.float32)
    for t in range(T):
        gi = x_proj[t * B:(t + 1) * B, :]                                # (B, 3*128) contiguous
        gh = jnp.dot(h, whh, preferred_element_type=jnp.float32)         # one MXU push / step

        # 128-aligned gate extraction: whole-vreg picks, no masked selects on the chain.
        r = jax.nn.sigmoid(gi[:, 0:GP] + gh[:, 0:GP])
        z = jax.nn.sigmoid(gi[:, GP:2 * GP] + gh[:, GP:2 * GP])
        n = jnp.tanh(gi[:, 2 * GP:] + r * (gh[:, 2 * GP:] + bhn))
        h = n + z * (h - n)                                              # == (1-z)*n + z*h

        out_ref[:, t, :] = h[:, :H].astype(out_ref.dtype)                # batch-first store


def pack_gru_params(w_ih, w_hh, b_ih, b_hh):
    """Pack PyTorch-layout GRU params into 128-lane-aligned, x@W-form blocks.

    Contract (torch.nn.GRU, single layer):
      w_ih, w_hh : (3H, H)  = weight_ih_l0 / weight_hh_l0, gate order (r, z, n)
      b_ih, b_hh : (3H,)    = bias_ih_l0   / bias_hh_l0
    """
    H = w_ih.shape[1]
    assert w_ih.shape == (3 * H, H) and w_hh.shape == (3 * H, H)
    assert b_ih.shape == (3 * H,) and b_hh.shape == (3 * H,)
    assert H <= GATE_PAD, "single-vreg gate packing assumes hidden_size <= 128"

    wih_p = jnp.zeros((H, 3 * GATE_PAD), jnp.float32)
    whh_p = jnp.zeros((GATE_PAD, 3 * GATE_PAD), jnp.float32)
    bx_p = jnp.zeros((1, 3 * GATE_PAD), jnp.float32)
    bhn_p = jnp.zeros((1, GATE_PAD), jnp.float32)
    for g in range(3):
        lo = g * GATE_PAD
        wih_p = wih_p.at[:, lo:lo + H].set(w_ih[g * H:(g + 1) * H, :].T)
        whh_p = whh_p.at[:H, lo:lo + H].set(w_hh[g * H:(g + 1) * H, :].T)
        bg = b_ih[g * H:(g + 1) * H]
        if g < 2:  # fold b_hr / b_hz into the input-side bias (off the serial chain)
            bg = bg + b_hh[g * H:(g + 1) * H]
        bx_p = bx_p.at[0, lo:lo + H].set(bg)
    bhn_p = bhn_p.at[0, :H].set(b_hh[2 * H:3 * H])
    return wih_p, whh_p, bx_p, bhn_p


def encoder_rnn_forward(tokens, embedding, packed_params):
    """tokens: (B, T) int32; embedding: (V, H) f32; packed_params from pack_gru_params.

    Returns (output (B, T, H), hidden (1, B, H)) — same as EncoderRNN.forward in eval mode.
    """
    wih_p, whh_p, bx_p, bhn_p = packed_params
    B, T = tokens.shape
    V, H = embedding.shape

    # Only wrapper glue left: flatten tokens seq-major (64 bytes of int index plumbing).
    tok_flat = tokens.T.reshape(T * B, 1).astype(jnp.int32)

    output = pl.pallas_call(
        encoder_gru_kernel,
        out_shape=jax.ShapeDtypeStruct((B, T, H), jnp.float32),
        in_specs=[pl.BlockSpec(memory_space=pltpu.MemorySpace.VMEM)] * 6,
        out_specs=pl.BlockSpec(memory_space=pltpu.MemorySpace.VMEM),
    )(tok_flat, embedding, wih_p, whh_p, bx_p, bhn_p)

    hidden = output[:, T - 1, :][None]           # final hidden == last timestep (1 layer)
    return output, hidden


def reference_forward(tokens, embedding, w_ih, w_hh, b_ih, b_hh):
    """Pure-JAX reference, PyTorch-layout weights (same math as torch.nn.GRU, eval dropout)."""
    x = jnp.take(embedding, tokens, axis=0)      # (B, T, H)
    B, T, H = x.shape
    W_ir, W_iz, W_in = w_ih[:H], w_ih[H:2 * H], w_ih[2 * H:]
    W_hr, W_hz, W_hn = w_hh[:H], w_hh[H:2 * H], w_hh[2 * H:]
    b_ir, b_iz, b_in = b_ih[:H], b_ih[H:2 * H], b_ih[2 * H:]
    b_hr, b_hz, b_hn = b_hh[:H], b_hh[H:2 * H], b_hh[2 * H:]

    def step(h, xt):
        r = jax.nn.sigmoid(xt @ W_ir.T + b_ir + h @ W_hr.T + b_hr)
        z = jax.nn.sigmoid(xt @ W_iz.T + b_iz + h @ W_hz.T + b_hz)
        n = jnp.tanh(xt @ W_in.T + b_in + r * (h @ W_hn.T + b_hn))
        h_new = (1.0 - z) * n + z * h
        return h_new, h_new

    h0 = jnp.zeros((B, H), jnp.float32)
    hT, ys = jax.lax.scan(step, h0, jnp.transpose(x, (1, 0, 2)))
    return jnp.transpose(ys, (1, 0, 2)), hT[None]


if __name__ == "__main__":
    # Small shapes implied by the module: vocab=input_size, hidden=hidden_size.
    VOCAB, HIDDEN, BATCH, SEQ = 20, 32, 2, 8

    key = jax.random.PRNGKey(0)
    k_emb, k_wih, k_whh, k_bih, k_bhh, k_tok = jax.random.split(key, 6)

    # Deterministic synthetic parameters in PyTorch layout:
    #   embedding (V, H); weight_*_l0 (3H, H); bias_*_l0 (3H,), gate order (r, z, n).
    scale = 1.0 / (HIDDEN ** 0.5)
    embedding = jax.random.normal(k_emb, (VOCAB, HIDDEN), jnp.float32)
    w_ih = jax.random.uniform(k_wih, (3 * HIDDEN, HIDDEN), jnp.float32, -scale, scale)
    w_hh = jax.random.uniform(k_whh, (3 * HIDDEN, HIDDEN), jnp.float32, -scale, scale)
    b_ih = jax.random.uniform(k_bih, (3 * HIDDEN,), jnp.float32, -scale, scale)
    b_hh = jax.random.uniform(k_bhh, (3 * HIDDEN,), jnp.float32, -scale, scale)

    tokens = jax.random.randint(k_tok, (BATCH, SEQ), 0, VOCAB, dtype=jnp.int32)

    packed = pack_gru_params(w_ih, w_hh, b_ih, b_hh)
    output, hidden = encoder_rnn_forward(tokens, embedding, packed)
    jax.block_until_ready((output, hidden))

    ref_out, ref_hid = reference_forward(tokens, embedding, w_ih, w_hh, b_ih, b_hh)
    assert output.shape == (BATCH, SEQ, HIDDEN)
    assert hidden.shape == (1, BATCH, HIDDEN)
    assert jnp.allclose(output, ref_out, atol=1e-4, rtol=1e-4)
    assert jnp.allclose(hidden, ref_hid, atol=1e-4, rtol=1e-4)

    print("KERNEL_OK")
</pallas_src>

<mosaic_0001>
module attributes {stable_mosaic.version = 11 : i64} {
  func.func @encoder_gru_kernel(%arg0: memref<16x1xi32, #tpu.memory_space<vmem>>, %arg1: memref<20x32xf32, #tpu.memory_space<vmem>>, %arg2: memref<32x384xf32, #tpu.memory_space<vmem>>, %arg3: memref<128x384xf32, #tpu.memory_space<vmem>>, %arg4: memref<1x384xf32, #tpu.memory_space<vmem>>, %arg5: memref<1x128xf32, #tpu.memory_space<vmem>>, %arg6: memref<2x8x32xf32, #tpu.memory_space<vmem>>) attributes {dimension_semantics = [], scalar_prefetch = 0 : i64, scratch_operands = 0 : i64, tpu.core_type = #tpu.core_type<tc>} {
    %c0 = arith.constant 0 : index
    %c0_0 = arith.constant 0 : index
    %0 = vector.load %arg0[%c0, %c0_0] : memref<16x1xi32, #tpu.memory_space<vmem>>, vector<16x1xi32>
    %1 = tpu.iota {dimensions = array<i32: 1>} : vector<16x20xi32>
    %2 = vector.broadcast %0 : vector<16x1xi32> to vector<16x20xi32>
    %3 = arith.cmpi eq, %2, %1 : vector<16x20xi32>
    %cst = arith.constant 1.000000e+00 : f32
    %cst_1 = arith.constant 0.000000e+00 : f32
    %4 = vector.broadcast %cst : f32 to vector<16x20xf32>
    %5 = vector.broadcast %cst_1 : f32 to vector<16x20xf32>
    %6 = arith.select %3, %4, %5 : vector<16x20xi1>, vector<16x20xf32>
    %c0_2 = arith.constant 0 : index
    %c0_3 = arith.constant 0 : index
    %7 = vector.load %arg1[%c0_2, %c0_3] : memref<20x32xf32, #tpu.memory_space<vmem>>, vector<20x32xf32>
    %cst_4 = arith.constant dense<0.000000e+00> : vector<16x32xf32>
    %8 = tpu.matmul %6, %7, %cst_4 {dimension_numbers = #tpu.dot_dimension_numbers<[1], [0], [0], [1], [0, 0, 1, 1], [], []>} : vector<16x20xf32>, vector<20x32xf32>, vector<16x32xf32> -> vector<16x32xf32>
    %c0_5 = arith.constant 0 : index
    %c0_6 = arith.constant 0 : index
    %9 = vector.load %arg2[%c0_5, %c0_6] : memref<32x384xf32, #tpu.memory_space<vmem>>, vector<32x384xf32>
    %cst_7 = arith.constant dense<0.000000e+00> : vector<16x384xf32>
    %10 = tpu.matmul %8, %9, %cst_7 {dimension_numbers = #tpu.dot_dimension_numbers<[1], [0], [0], [1], [0, 0, 1, 1], [], []>} : vector<16x32xf32>, vector<32x384xf32>, vector<16x384xf32> -> vector<16x384xf32>
    %c0_8 = arith.constant 0 : index
    %c0_9 = arith.constant 0 : index
    %11 = vector.load %arg4[%c0_8, %c0_9] : memref<1x384xf32, #tpu.memory_space<vmem>>, vector<1x384xf32>
    %12 = vector.broadcast %11 : vector<1x384xf32> to vector<16x384xf32>
    %13 = arith.addf %10, %12 : vector<16x384xf32>
    %c0_10 = arith.constant 0 : index
    %c0_11 = arith.constant 0 : index
    %14 = vector.load %arg3[%c0_10, %c0_11] : memref<128x384xf32, #tpu.memory_space<vmem>>, vector<128x384xf32>
    %c0_12 = arith.constant 0 : index
    %c0_13 = arith.constant 0 : index
    %15 = vector.load %arg5[%c0_12, %c0_13] : memref<1x128xf32, #tpu.memory_space<vmem>>, vector<1x128xf32>
    %16 = vector.shape_cast %15 : vector<1x128xf32> to vector<1x128xf32>
    %17 = vector.broadcast %16 : vector<1x128xf32> to vector<2x128xf32>
    %cst_14 = arith.constant 0.000000e+00 : f32
    %18 = vector.broadcast %cst_14 : f32 to vector<2x128xf32>
    %19 = vector.extract_strided_slice %13 {offsets = [0, 0], sizes = [2, 384], strides = [1, 1]} : vector<16x384xf32> to vector<2x384xf32>
    %cst_15 = arith.constant dense<0.000000e+00> : vector<2x384xf32>
    %20 = tpu.matmul %18, %14, %cst_15 {dimension_numbers = #tpu.dot_dimension_numbers<[1], [0], [0], [1], [0, 0, 1, 1], [], []>} : vector<2x128xf32>, vector<128x384xf32>, vector<2x384xf32> -> vector<2x384xf32>
    %21 = vector.extract_strided_slice %19 {offsets = [0, 0], sizes = [2, 128], strides = [1, 1]} : vector<2x384xf32> to vector<2x128xf32>
    %22 = vector.extract_strided_slice %20 {offsets = [0, 0], sizes = [2, 128], strides = [1, 1]} : vector<2x384xf32> to vector<2x128xf32>
    %23 = arith.addf %21, %22 : vector<2x128xf32>
    %24 = arith.negf %23 : vector<2x128xf32>
    %25 = math.exp %24 : vector<2x128xf32>
    %cst_16 = arith.constant 1.000000e+00 : f32
    %26 = vector.broadcast %cst_16 : f32 to vector<2x128xf32>
    %27 = arith.addf %26, %25 : vector<2x128xf32>
    %28 = arith.divf %26, %27 : vector<2x128xf32>
    %29 = vector.extract_strided_slice %19 {offsets = [0, 128], sizes = [2, 128], strides = [1, 1]} : vector<2x384xf32> to vector<2x128xf32>
    %30 = vector.extract_strided_slice %20 {offsets = [0, 128], sizes = [2, 128], strides = [1, 1]} : vector<2x384xf32> to vector<2x128xf32>
    %31 = arith.addf %29, %30 : vector<2x128xf32>
    %32 = arith.negf %31 : vector<2x128xf32>
    %33 = math.exp %32 : vector<2x128xf32>
    %cst_17 = arith.constant 1.000000e+00 : f32
    %34 = vector.broadcast %cst_17 : f32 to vector<2x128xf32>
    %35 = arith.addf %34, %33 : vector<2x128xf32>
    %36 = arith.divf %34, %35 : vector<2x128xf32>
    %37 = vector.extract_strided_slice %19 {offsets = [0, 256], sizes = [2, 128], strides = [1, 1]} : vector<2x384xf32> to vector<2x128xf32>
    %38 = vector.extract_strided_slice %20 {offsets = [0, 256], sizes = [2, 128], strides = [1, 1]} : vector<2x384xf32> to vector<2x128xf32>
    %39 = arith.addf %38, %17 : vector<2x128xf32>
    %40 = arith.mulf %28, %39 : vector<2x128xf32>
    %41 = arith.addf %37, %40 : vector<2x128xf32>
    %42 = math.tanh %41 : vector<2x128xf32>
    %43 = arith.subf %18, %42 : vector<2x128xf32>
    %44 = arith.mulf %36, %43 : vector<2x128xf32>
    %45 = arith.addf %42, %44 : vector<2x128xf32>
    %46 = vector.extract_strided_slice %45 {offsets = [0, 0], sizes = [2, 32], strides = [1, 1]} : vector<2x128xf32> to vector<2x32xf32>
    %c0_18 = arith.constant 0 : index
    %c0_19 = arith.constant 0 : index
    %c0_20 = arith.constant 0 : index
    %47 = vector.load %arg6[%c0_18, %c0_19, %c0_20] : memref<2x8x32xf32, #tpu.memory_space<vmem>>, vector<2x1x32xf32>
    %48 = vector.shape_cast %47 : vector<2x1x32xf32> to vector<2x32xf32>
    %49 = vector.shape_cast %46 : vector<2x32xf32> to vector<2x1x32xf32>
    tpu.vector_store %arg6[%c0_18, %c0_19, %c0_20], %49 {strides = array<i32>} : memref<2x8x32xf32, #tpu.memory_space<vmem>>, vector<2x1x32xf32>,
    %50 = vector.extract_strided_slice %13 {offsets = [2, 0], sizes = [2, 384], strides = [1, 1]} : vector<16x384xf32> to vector<2x384xf32>
    %cst_21 = arith.constant dense<0.000000e+00> : vector<2x384xf32>
    %51 = tpu.matmul %45, %14, %cst_21 {dimension_numbers = #tpu.dot_dimension_numbers<[1], [0], [0], [1], [0, 0, 1, 1], [], []>} : vector<2x128xf32>, vector<128x384xf32>, vector<2x384xf32> -> vector<2x384xf32>
    %52 = vector.extract_strided_slice %50 {offsets = [0, 0], sizes = [2, 128], strides = [1, 1]} : vector<2x384xf32> to vector<2x128xf32>
    %53 = vector.extract_strided_slice %51 {offsets = [0, 0], sizes = [2, 128], strides = [1, 1]} : vector<2x384xf32> to vector<2x128xf32>
    %54 = arith.addf %52, %53 : vector<2x128xf32>
    %55 = arith.negf %54 : vector<2x128xf32>
    %56 = math.exp %55 : vector<2x128xf32>
    %cst_22 = arith.constant 1.000000e+00 : f32
    %57 = vector.broadcast %cst_22 : f32 to vector<2x128xf32>
    %58 = arith.addf %57, %56 : vector<2x128xf32>
    %59 = arith.divf %57, %58 : vector<2x128xf32>
    %60 = vector.extract_strided_slice %50 {offsets = [0, 128], sizes = [2, 128], strides = [1, 1]} : vector<2x384xf32> to vector<2x128xf32>
    %61 = vector.extract_strided_slice %51 {offsets = [0, 128], sizes = [2, 128], strides = [1, 1]} : vector<2x384xf32> to vector<2x128xf32>
    %62 = arith.addf %60, %61 : vector<2x128xf32>
    %63 = arith.negf %62 : vector<2x128xf32>
    %64 = math.exp %63 : vector<2x128xf32>
    %cst_23 = arith.constant 1.000000e+00 : f32
    %65 = vector.broadcast %cst_23 : f32 to vector<2x128xf32>
    %66 = arith.addf %65, %64 : vector<2x128xf32>
    %67 = arith.divf %65, %66 : vector<2x128xf32>
    %68 = vector.extract_strided_slice %50 {offsets = [0, 256], sizes = [2, 128], strides = [1, 1]} : vector<2x384xf32> to vector<2x128xf32>
    %69 = vector.extract_strided_slice %51 {offsets = [0, 256], sizes = [2, 128], strides = [1, 1]} : vector<2x384xf32> to vector<2x128xf32>
    %70 = arith.addf %69, %17 : vector<2x128xf32>
    %71 = arith.mulf %59, %70 : vector<2x128xf32>
    %72 = arith.addf %68, %71 : vector<2x128xf32>
    %73 = math.tanh %72 : vector<2x128xf32>
    %74 = arith.subf %45, %73 : vector<2x128xf32>
    %75 = arith.mulf %67, %74 : vector<2x128xf32>
    %76 = arith.addf %73, %75 : vector<2x128xf32>
    %77 = vector.extract_strided_slice %76 {offsets = [0, 0], sizes = [2, 32], strides = [1, 1]} : vector<2x128xf32> to vector<2x32xf32>
    %c0_24 = arith.constant 0 : index
    %c1 = arith.constant 1 : index
    %c0_25 = arith.constant 0 : index
    %78 = vector.load %arg6[%c0_24, %c1, %c0_25] : memref<2x8x32xf32, #tpu.memory_space<vmem>>, vector<2x1x32xf32>
    %79 = vector.shape_cast %78 : vector<2x1x32xf32> to vector<2x32xf32>
    %80 = vector.shape_cast %77 : vector<2x32xf32> to vector<2x1x32xf32>
    tpu.vector_store %arg6[%c0_24, %c1, %c0_25], %80 {strides = array<i32>} : memref<2x8x32xf32, #tpu.memory_space<vmem>>, vector<2x1x32xf32>,
    %81 = vector.extract_strided_slice %13 {offsets = [4, 0], sizes = [2, 384], strides = [1, 1]} : vector<16x384xf32> to vector<2x384xf32>
    %cst_26 = arith.constant dense<0.000000e+00> : vector<2x384xf32>
    %82 = tpu.matmul %76, %14, %cst_26 {dimension_numbers = #tpu.dot_dimension_numbers<[1], [0], [0], [1], [0, 0, 1, 1], [], []>} : vector<2x128xf32>, vector<128x384xf32>, vector<2x384xf32> -> vector<2x384xf32>
    %83 = vector.extract_strided_slice %81 {offsets = [0, 0], sizes = [2, 128], strides = [1, 1]} : vector<2x384xf32> to vector<2x128xf32>
    %84 = vector.extract_strided_slice %82 {offsets = [0, 0], sizes = [2, 128], strides = [1, 1]} : vector<2x384xf32> to vector<2x128xf32>
    %85 = arith.addf %83, %84 : vector<2x128xf32>
    %86 = arith.negf %85 : vector<2x128xf32>
    %87 = math.exp %86 : vector<2x128xf32>
    %cst_27 = arith.constant 1.000000e+00 : f32
    %88 = vector.broadcast %cst_27 : f32 to vector<2x128xf32>
    %89 = arith.addf %88, %87 : vector<2x128xf32>
    %90 = arith.divf %88, %89 : vector<2x128xf32>
    %91 = vector.extract_strided_slice %81 {offsets = [0, 128], sizes = [2, 128], strides = [1, 1]} : vector<2x384xf32> to vector<2x128xf32>
    %92 = vector.extract_strided_slice %82 {offsets = [0, 128], sizes = [2, 128], strides = [1, 1]} : vector<2x384xf32> to vector<2x128xf32>
    %93 = arith.addf %91, %92 : vector<2x128xf32>
    %94 = arith.negf %93 : vector<2x128xf32>
    %95 = math.exp %94 : vector<2x128xf32>
    %cst_28 = arith.constant 1.000000e+00 : f32
    %96 = vector.broadcast %cst_28 : f32 to vector<2x128xf32>
    %97 = arith.addf %96, %95 : vector<2x128xf32>
    %98 = arith.divf %96, %97 : vector<2x128xf32>
    %99 = vector.extract_strided_slice %81 {offsets = [0, 256], sizes = [2, 128], strides = [1, 1]} : vector<2x384xf32> to vector<2x128xf32>
    %100 = vector.extract_strided_slice %82 {offsets = [0, 256], sizes = [2, 128], strides = [1, 1]} : vector<2x384xf32> to vector<2x128xf32>
    %101 = arith.addf %100, %17 : vector<2x128xf32>
    %102 = arith.mulf %90, %101 : vector<2x128xf32>
    %103 = arith.addf %99, %102 : vector<2x128xf32>
    %104 = math.tanh %103 : vector<2x128xf32>
    %105 = arith.subf %76, %104 : vector<2x128xf32>
    %106 = arith.mulf %98, %105 : vector<2x128xf32>
    %107 = arith.addf %104, %106 : vector<2x128xf32>
    %108 = vector.extract_strided_slice %107 {offsets = [0, 0], sizes = [2, 32], strides = [1, 1]} : vector<2x128xf32> to vector<2x32xf32>
    %c0_29 = arith.constant 0 : index
    %c2 = arith.constant 2 : index
    %c0_30 = arith.constant 0 : index
    %109 = vector.load %arg6[%c0_29, %c2, %c0_30] : memref<2x8x32xf32, #tpu.memory_space<vmem>>, vector<2x1x32xf32>
    %110 = vector.shape_cast %109 : vector<2x1x32xf32> to vector<2x32xf32>
    %111 = vector.shape_cast %108 : vector<2x32xf32> to vector<2x1x32xf32>
    tpu.vector_store %arg6[%c0_29, %c2, %c0_30], %111 {strides = array<i32>} : memref<2x8x32xf32, #tpu.memory_space<vmem>>, vector<2x1x32xf32>,
    %112 = vector.extract_strided_slice %13 {offsets = [6, 0], sizes = [2, 384], strides = [1, 1]} : vector<16x384xf32> to vector<2x384xf32>
    %cst_31 = arith.constant dense<0.000000e+00> : vector<2x384xf32>
    %113 = tpu.matmul %107, %14, %cst_31 {dimension_numbers = #tpu.dot_dimension_numbers<[1], [0], [0], [1], [0, 0, 1, 1], [], []>} : vector<2x128xf32>, vector<128x384xf32>, vector<2x384xf32> -> vector<2x384xf32>
    %114 = vector.extract_strided_slice %112 {offsets = [0, 0], sizes = [2, 128], strides = [1, 1]} : vector<2x384xf32> to vector<2x128xf32>
    %115 = vector.extract_strided_slice %113 {offsets = [0, 0], sizes = [2, 128], strides = [1, 1]} : vector<2x384xf32> to vector<2x128xf32>
    %116 = arith.addf %114, %115 : vector<2x128xf32>
    %117 = arith.negf %116 : vector<2x128xf32>
    %118 = math.exp %117 : vector<2x128xf32>
    %cst_32 = arith.constant 1.000000e+00 : f32
    %119 = vector.broadcast %cst_32 : f32 to vector<2x128xf32>
    %120 = arith.addf %119, %118 : vector<2x128xf32>
    %121 = arith.divf %119, %120 : vector<2x128xf32>
    %122 = vector.extract_strided_slice %112 {offsets = [0, 128], sizes = [2, 128], strides = [1, 1]} : vector<2x384xf32> to vector<2x128xf32>
    %123 = vector.extract_strided_slice %113 {offsets = [0, 128], sizes = [2, 128], strides = [1, 1]} : vector<2x384xf32> to vector<2x128xf32>
    %124 = arith.addf %122, %123 : vector<2x128xf32>
    %125 = arith.negf %124 : vector<2x128xf32>
    %126 = math.exp %125 : vector<2x128xf32>
    %cst_33 = arith.constant 1.000000e+00 : f32
    %127 = vector.broadcast %cst_33 : f32 to vector<2x128xf32>
    %128 = arith.addf %127, %126 : vector<2x128xf32>
    %129 = arith.divf %127, %128 : vector<2x128xf32>
    %130 = vector.extract_strided_slice %112 {offsets = [0, 256], sizes = [2, 128], strides = [1, 1]} : vector<2x384xf32> to vector<2x128xf32>
    %131 = vector.extract_strided_slice %113 {offsets = [0, 256], sizes = [2, 128], strides = [1, 1]} : vector<2x384xf32> to vector<2x128xf32>
    %132 = arith.addf %131, %17 : vector<2x128xf32>
    %133 = arith.mulf %121, %132 : vector<2x128xf32>
    %134 = arith.addf %130, %133 : vector<2x128xf32>
    %135 = math.tanh %134 : vector<2x128xf32>
    %136 = arith.subf %107, %135 : vector<2x128xf32>
    %137 = arith.mulf %129, %136 : vector<2x128xf32>
    %138 = arith.addf %135, %137 : vector<2x128xf32>
    %139 = vector.extract_strided_slice %138 {offsets = [0, 0], sizes = [2, 32], strides = [1, 1]} : vector<2x128xf32> to vector<2x32xf32>
    %c0_34 = arith.constant 0 : index
    %c3 = arith.constant 3 : index
    %c0_35 = arith.constant 0 : index
    %140 = vector.load %arg6[%c0_34, %c3, %c0_35] : memref<2x8x32xf32, #tpu.memory_space<vmem>>, vector<2x1x32xf32>
    %141 = vector.shape_cast %140 : vector<2x1x32xf32> to vector<2x32xf32>
    %142 = vector.shape_cast %139 : vector<2x32xf32> to vector<2x1x32xf32>
    tpu.vector_store %arg6[%c0_34, %c3, %c0_35], %142 {strides = array<i32>} : memref<2x8x32xf32, #tpu.memory_space<vmem>>, vector<2x1x32xf32>,
    %143 = vector.extract_strided_slice %13 {offsets = [8, 0], sizes = [2, 384], strides = [1, 1]} : vector<16x384xf32> to vector<2x384xf32>
    %cst_36 = arith.constant dense<0.000000e+00> : vector<2x384xf32>
    %144 = tpu.matmul %138, %14, %cst_36 {dimension_numbers = #tpu.dot_dimension_numbers<[1], [0], [0], [1], [0, 0, 1, 1], [], []>} : vector<2x128xf32>, vector<128x384xf32>, vector<2x384xf32> -> vector<2x384xf32>
    %145 = vector.extract_strided_slice %143 {offsets = [0, 0], sizes = [2, 128], strides = [1, 1]} : vector<2x384xf32> to vector<2x128xf32>
    %146 = vector.extract_strided_slice %144 {offsets = [0, 0], sizes = [2, 128], strides = [1, 1]} : vector<2x384xf32> to vector<2x128xf32>
    %147 = arith.addf %145, %146 : vector<2x128xf32>
    %148 = arith.negf %147 : vector<2x128xf32>
    %149 = math.exp %148 : vector<2x128xf32>
    %cst_37 = arith.constant 1.000000e+00 : f32
    %150 = vector.broadcast %cst_37 : f32 to vector<2x128xf32>
    %151 = arith.addf %150, %149 : vector<2x128xf32>
    %152 = arith.divf %150, %151 : vector<2x128xf32>
    %153 = vector.extract_strided_slice %143 {offsets = [0, 128], sizes = [2, 128], strides = [1, 1]} : vector<2x384xf32> to vector<2x128xf32>
    %154 = vector.extract_strided_slice %144 {offsets = [0, 128], sizes = [2, 128], strides = [1, 1]} : vector<2x384xf32> to vector<2x128xf32>
    %155 = arith.addf %153, %154 : vector<2x128xf32>
    %156 = arith.negf %155 : vector<2x128xf32>
    %157 = math.exp %156 : vector<2x128xf32>
    %cst_38 = arith.constant 1.000000e+00 : f32
    %158 = vector.broadcast %cst_38 : f32 to vector<2x128xf32>
    %159 = arith.addf %158, %157 : vector<2x128xf32>
    %160 = arith.divf %158, %159 : vector<2x128xf32>
    %161 = vector.extract_strided_slice %143 {offsets = [0, 256], sizes = [2, 128], strides = [1, 1]} : vector<2x384xf32> to vector<2x128xf32>
    %162 = vector.extract_strided_slice %144 {offsets = [0, 256], sizes = [2, 128], strides = [1, 1]} : vector<2x384xf32> to vector<2x128xf32>
    %163 = arith.addf %162, %17 : vector<2x128xf32>
    %164 = arith.mulf %152, %163 : vector<2x128xf32>
    %165 = arith.addf %161, %164 : vector<2x128xf32>
    %166 = math.tanh %165 : vector<2x128xf32>
    %167 = arith.subf %138, %166 : vector<2x128xf32>
    %168 = arith.mulf %160, %167 : vector<2x128xf32>
    %169 = arith.addf %166, %168 : vector<2x128xf32>
    %170 = vector.extract_strided_slice %169 {offsets = [0, 0], sizes = [2, 32], strides = [1, 1]} : vector<2x128xf32> to vector<2x32xf32>
    %c0_39 = arith.constant 0 : index
    %c4 = arith.constant 4 : index
    %c0_40 = arith.constant 0 : index
    %171 = vector.load %arg6[%c0_39, %c4, %c0_40] : memref<2x8x32xf32, #tpu.memory_space<vmem>>, vector<2x1x32xf32>
    %172 = vector.shape_cast %171 : vector<2x1x32xf32> to vector<2x32xf32>
    %173 = vector.shape_cast %170 : vector<2x32xf32> to vector<2x1x32xf32>
    tpu.vector_store %arg6[%c0_39, %c4, %c0_40], %173 {strides = array<i32>} : memref<2x8x32xf32, #tpu.memory_space<vmem>>, vector<2x1x32xf32>,
    %174 = vector.extract_strided_slice %13 {offsets = [10, 0], sizes = [2, 384], strides = [1, 1]} : vector<16x384xf32> to vector<2x384xf32>
    %cst_41 = arith.constant dense<0.000000e+00> : vector<2x384xf32>
    %175 = tpu.matmul %169, %14, %cst_41 {dimension_numbers = #tpu.dot_dimension_numbers<[1], [0], [0], [1], [0, 0, 1, 1], [], []>} : vector<2x128xf32>, vector<128x384xf32>, vector<2x384xf32> -> vector<2x384xf32>
    %176 = vector.extract_strided_slice %174 {offsets = [0, 0], sizes = [2, 128], strides = [1, 1]} : vector<2x384xf32> to vector<2x128xf32>
    %177 = vector.extract_strided_slice %175 {offsets = [0, 0], sizes = [2, 128], strides = [1, 1]} : vector<2x384xf32> to vector<2x128xf32>
    %178 = arith.addf %176, %177 : vector<2x128xf32>
    %179 = arith.negf %178 : vector<2x128xf32>
    %180 = math.exp %179 : vector<2x128xf32>
    %cst_42 = arith.constant 1.000000e+00 : f32
    %181 = vector.broadcast %cst_42 : f32 to vector<2x128xf32>
    %182 = arith.addf %181, %180 : vector<2x128xf32>
    %183 = arith.divf %181, %182 : vector<2x128xf32>
    %184 = vector.extract_strided_slice %174 {offsets = [0, 128], sizes = [2, 128], strides = [1, 1]} : vector<2x384xf32> to vector<2x128xf32>
    %185 = vector.extract_strided_slice %175 {offsets = [0, 128], sizes = [2, 128], strides = [1, 1]} : vector<2x384xf32> to vector<2x128xf32>
    %186 = arith.addf %184, %185 : vector<2x128xf32>
    %187 = arith.negf %186 : vector<2x128xf32>
    %188 = math.exp %187 : vector<2x128xf32>
    %cst_43 = arith.constant 1.000000e+00 : f32
    %189 = vector.broadcast %cst_43 : f32 to vector<2x128xf32>
    %190 = arith.addf %189, %188 : vector<2x128xf32>
    %191 = arith.divf %189, %190 : vector<2x128xf32>
    %192 = vector.extract_strided_slice %174 {offsets = [0, 256], sizes = [2, 128], strides = [1, 1]} : vector<2x384xf32> to vector<2x128xf32>
    %193 = vector.extract_strided_slice %175 {offsets = [0, 256], sizes = [2, 128], strides = [1, 1]} : vector<2x384xf32> to vector<2x128xf32>
    %194 = arith.addf %193, %17 : vector<2x128xf32>
    %195 = arith.mulf %183, %194 : vector<2x128xf32>
    %196 = arith.addf %192, %195 : vector<2x128xf32>
    %197 = math.tanh %196 : vector<2x128xf32>
    %198 = arith.subf %169, %197 : vector<2x128xf32>
    %199 = arith.mulf %191, %198 : vector<2x128xf32>
    %200 = arith.addf %197, %199 : vector<2x128xf32>
    %201 = vector.extract_strided_slice %200 {offsets = [0, 0], sizes = [2, 32], strides = [1, 1]} : vector<2x128xf32> to vector<2x32xf32>
    %c0_44 = arith.constant 0 : index
    %c5 = arith.constant 5 : index
    %c0_45 = arith.constant 0 : index
    %202 = vector.load %arg6[%c0_44, %c5, %c0_45] : memref<2x8x32xf32, #tpu.memory_space<vmem>>, vector<2x1x32xf32>
    %203 = vector.shape_cast %202 : vector<2x1x32xf32> to vector<2x32xf32>
    %204 = vector.shape_cast %201 : vector<2x32xf32> to vector<2x1x32xf32>
    tpu.vector_store %arg6[%c0_44, %c5, %c0_45], %204 {strides = array<i32>} : memref<2x8x32xf32, #tpu.memory_space<vmem>>, vector<2x1x32xf32>,
    %205 = vector.extract_strided_slice %13 {offsets = [12, 0], sizes = [2, 384], strides = [1, 1]} : vector<16x384xf32> to vector<2x384xf32>
    %cst_46 = arith.constant dense<0.000000e+00> : vector<2x384xf32>
    %206 = tpu.matmul %200, %14, %cst_46 {dimension_numbers = #tpu.dot_dimension_numbers<[1], [0], [0], [1], [0, 0, 1, 1], [], []>} : vector<2x128xf32>, vector<128x384xf32>, vector<2x384xf32> -> vector<2x384xf32>
    %207 = vector.extract_strided_slice %205 {offsets = [0, 0], sizes = [2, 128], strides = [1, 1]} : vector<2x384xf32> to vector<2x128xf32>
    %208 = vector.extract_strided_slice %206 {offsets = [0, 0], sizes = [2, 128], strides = [1, 1]} : vector<2x384xf32> to vector<2x128xf32>
    %209 = arith.addf %207, %208 : vector<2x128xf32>
    %210 = arith.negf %209 : vector<2x128xf32>
    %211 = math.exp %210 : vector<2x128xf32>
    %cst_47 = arith.constant 1.000000e+00 : f32
    %212 = vector.broadcast %cst_47 : f32 to vector<2x128xf32>
    %213 = arith.addf %212, %211 : vector<2x128xf32>
    %214 = arith.divf %212, %213 : vector<2x128xf32>
    %215 = vector.extract_strided_slice %205 {offsets = [0, 128], sizes = [2, 128], strides = [1, 1]} : vector<2x384xf32> to vector<2x128xf32>
    %216 = vector.extract_strided_slice %206 {offsets = [0, 128], sizes = [2, 128], strides = [1, 1]} : vector<2x384xf32> to vector<2x128xf32>
    %217 = arith.addf %215, %216 : vector<2x128xf32>
    %218 = arith.negf %217 : vector<2x128xf32>
    %219 = math.exp %218 : vector<2x128xf32>
    %cst_48 = arith.constant 1.000000e+00 : f32
    %220 = vector.broadcast %cst_48 : f32 to vector<2x128xf32>
    %221 = arith.addf %220, %219 : vector<2x128xf32>
    %222 = arith.divf %220, %221 : vector<2x128xf32>
    %223 = vector.extract_strided_slice %205 {offsets = [0, 256], sizes = [2, 128], strides = [1, 1]} : vector<2x384xf32> to vector<2x128xf32>
    %224 = vector.extract_strided_slice %206 {offsets = [0, 256], sizes = [2, 128], strides = [1, 1]} : vector<2x384xf32> to vector<2x128xf32>
    %225 = arith.addf %224, %17 : vector<2x128xf32>
    %226 = arith.mulf %214, %225 : vector<2x128xf32>
    %227 = arith.addf %223, %226 : vector<2x128xf32>
    %228 = math.tanh %227 : vector<2x128xf32>
    %229 = arith.subf %200, %228 : vector<2x128xf32>
    %230 = arith.mulf %222, %229 : vector<2x128xf32>
    %231 = arith.addf %228, %230 : vector<2x128xf32>
    %232 = vector.extract_strided_slice %231 {offsets = [0, 0], sizes = [2, 32], strides = [1, 1]} : vector<2x128xf32> to vector<2x32xf32>
    %c0_49 = arith.constant 0 : index
    %c6 = arith.constant 6 : index
    %c0_50 = arith.constant 0 : index
    %233 = vector.load %arg6[%c0_49, %c6, %c0_50] : memref<2x8x32xf32, #tpu.memory_space<vmem>>, vector<2x1x32xf32>
    %234 = vector.shape_cast %233 : vector<2x1x32xf32> to vector<2x32xf32>
    %235 = vector.shape_cast %232 : vector<2x32xf32> to vector<2x1x32xf32>
    tpu.vector_store %arg6[%c0_49, %c6, %c0_50], %235 {strides = array<i32>} : memref<2x8x32xf32, #tpu.memory_space<vmem>>, vector<2x1x32xf32>,
    %236 = vector.extract_strided_slice %13 {offsets = [14, 0], sizes = [2, 384], strides = [1, 1]} : vector<16x384xf32> to vector<2x384xf32>
    %cst_51 = arith.constant dense<0.000000e+00> : vector<2x384xf32>
    %237 = tpu.matmul %231, %14, %cst_51 {dimension_numbers = #tpu.dot_dimension_numbers<[1], [0], [0], [1], [0, 0, 1, 1], [], []>} : vector<2x128xf32>, vector<128x384xf32>, vector<2x384xf32> -> vector<2x384xf32>
    %238 = vector.extract_strided_slice %236 {offsets = [0, 0], sizes = [2, 128], strides = [1, 1]} : vector<2x384xf32> to vector<2x128xf32>
    %239 = vector.extract_strided_slice %237 {offsets = [0, 0], sizes = [2, 128], strides = [1, 1]} : vector<2x384xf32> to vector<2x128xf32>
    %240 = arith.addf %238, %239 : vector<2x128xf32>
    %241 = arith.negf %240 : vector<2x128xf32>
    %242 = math.exp %241 : vector<2x128xf32>
    %cst_52 = arith.constant 1.000000e+00 : f32
    %243 = vector.broadcast %cst_52 : f32 to vector<2x128xf32>
    %244 = arith.addf %243, %242 : vector<2x128xf32>
    %245 = arith.divf %243, %244 : vector<2x128xf32>
    %246 = vector.extract_strided_slice %236 {offsets = [0, 128], sizes = [2, 128], strides = [1, 1]} : vector<2x384xf32> to vector<2x128xf32>
    %247 = vector.extract_strided_slice %237 {offsets = [0, 128], sizes = [2, 128], strides = [1, 1]} : vector<2x384xf32> to vector<2x128xf32>
    %248 = arith.addf %246, %247 : vector<2x128xf32>
    %249 = arith.negf %248 : vector<2x128xf32>
    %250 = math.exp %249 : vector<2x128xf32>
    %cst_53 = arith.constant 1.000000e+00 : f32
    %251 = vector.broadcast %cst_53 : f32 to vector<2x128xf32>
    %252 = arith.addf %251, %250 : vector<2x128xf32>
    %253 = arith.divf %251, %252 : vector<2x128xf32>
    %254 = vector.extract_strided_slice %236 {offsets = [0, 256], sizes = [2, 128], strides = [1, 1]} : vector<2x384xf32> to vector<2x128xf32>
    %255 = vector.extract_strided_slice %237 {offsets = [0, 256], sizes = [2, 128], strides = [1, 1]} : vector<2x384xf32> to vector<2x128xf32>
    %256 = arith.addf %255, %17 : vector<2x128xf32>
    %257 = arith.mulf %245, %256 : vector<2x128xf32>
    %258 = arith.addf %254, %257 : vector<2x128xf32>
    %259 = math.tanh %258 : vector<2x128xf32>
    %260 = arith.subf %231, %259 : vector<2x128xf32>
    %261 = arith.mulf %253, %260 : vector<2x128xf32>
    %262 = arith.addf %259, %261 : vector<2x128xf32>
    %263 = vector.extract_strided_slice %262 {offsets = [0, 0], sizes = [2, 32], strides = [1, 1]} : vector<2x128xf32> to vector<2x32xf32>
    %c0_54 = arith.constant 0 : index
    %c7 = arith.constant 7 : index
    %c0_55 = arith.constant 0 : index
    %264 = vector.load %arg6[%c0_54, %c7, %c0_55] : memref<2x8x32xf32, #tpu.memory_space<vmem>>, vector<2x1x32xf32>
    %265 = vector.shape_cast %264 : vector<2x1x32xf32> to vector<2x32xf32>
    %266 = vector.shape_cast %263 : vector<2x32xf32> to vector<2x1x32xf32>
    tpu.vector_store %arg6[%c0_54, %c7, %c0_55], %266 {strides = array<i32>} : memref<2x8x32xf32, #tpu.memory_space<vmem>>, vector<2x1x32xf32>,
    return
  }
}

</mosaic_0001>

<llo_original>
// kernel: tpu_custom_call.1
$region0: #{tpu_custom_call.1}
  #allocation0 [shape = 'u32[]', space=smem, size = 0x4, offset = 0x4, fixed_abs, tag = 'smem constant byte address 0x4 - core index']
  #allocation1 [shape = 'u32[144,128]{1,0:T(1,128)}', space=vmem, size = 0x12000, scoped, tag = 'internal scratch']
  %s0 = inlined_call_operand.vmem [shape: s32[16,1], index: 0, kind: input, shape index: {}]
  %s1 = inlined_call_operand.hbm [shape: f32[20,32], index: 1, kind: input, shape index: {}]
  %s2 = inlined_call_operand.hbm [shape: f32[32,384], index: 2, kind: input, shape index: {}]
  %s3 = inlined_call_operand.hbm [shape: f32[128,384], index: 3, kind: input, shape index: {}]
  %s4 = inlined_call_operand.vmem [shape: f32[1,384], index: 4, kind: input, shape index: {}]
  %s5 = inlined_call_operand.vmem [shape: f32[1,128], index: 5, kind: input, shape index: {}]
  %s6 = inlined_call_operand.hbm [shape: f32[2,8,32], index: 6, kind: output, shape index: {}]
  %s7 = sld [smem:[#allocation0]]
  $region46: #{tpu_custom_call.1} parent=0
    _
  %s9 = ssub.s32 1, %s7
  %s10 = scalar_select 0, %s9, %s7
  $region1: #{tpu_custom_call.1} parent=0
    #allocation2 [shape = 'u8[12288]{0}', space=vmem, size = 0x3000, scoped, tag = 'input window, operand 1, single buffered']
    #allocation3 [shape = 's32[1]{0}', space=sflag, size = 0x4, scoped, tag = 'scoped memory for tpu_custom_call.1']
    #allocation4 [shape = 's32[1]{0}', space=sflag, size = 0x4, scoped, tag = 'scoped memory for tpu_custom_call.1']
    #allocation5 [shape = 'u8[49152]{0}', space=vmem, size = 0xc000, scoped, tag = 'input window, operand 2, single buffered']
    #allocation6 [shape = 's32[1]{0}', space=sflag, size = 0x4, scoped, tag = 'scoped memory for tpu_custom_call.1']
    #allocation7 [shape = 'u8[196608]{0}', space=vmem, size = 0x30000, scoped, tag = 'input window, operand 3, single buffered']
    #allocation8 [shape = 'u8[8192]{0}', space=vmem, size = 0x2000, scoped, tag = 'output window, operand 0, single buffered']
    %11 = vsyncpa [#allocation3], 0
    %12 = vsyncpa [#allocation6], 0
    %13 = vsyncpa [#allocation4], 0
    // Predicated region
    $region2: #{tpu_custom_call.1} parent=1 // pred_check
      _
    $region3: #{tpu_custom_call.1} parent=1 // pred_check_branch
      %15 = sbr.rel (0) target = $region5
    $region4: #{tpu_custom_call.1} parent=1 // pred_region
      _
    $region5: #{tpu_custom_call.1} parent=1 // pred_fallthru
      _
    // Predicated region
    $region6: #{tpu_custom_call.1} parent=1 // pred_check
      _
    $region7: #{tpu_custom_call.1} parent=1 // pred_check_branch
      %17 = sbr.rel (0) target = $region9
    $region8: #{tpu_custom_call.1} parent=1 // pred_region
      %s19 = ssub.s32 384, 384
      %20 = vsyncadd [#allocation3], %s19
      %s21 = sshll.u32 [#allocation2], 4
      %s22 = int_to_ptr.vmem [resolvable:$true] %s21
      %27 = dma.hbm_to_vmem [thread:$0]  %s1, 384, %s22, [#allocation3], 128, 128, 8
    $region9: #{tpu_custom_call.1} parent=1 // pred_fallthru
      _
    // Predicated region
    $region10: #{tpu_custom_call.1} parent=1 // pred_check
      _
    $region11: #{tpu_custom_call.1} parent=1 // pred_check_branch
      %29 = sbr.rel (0) target = $region13
    $region12: #{tpu_custom_call.1} parent=1 // pred_region
      %s31 = ssub.s32 1536, 1536
      %32 = vsyncadd [#allocation6], %s31
      %s33 = sshll.u32 [#allocation5], 4
      %s34 = int_to_ptr.vmem [resolvable:$true] %s33
      %39 = dma.hbm_to_vmem [thread:$0]  %s2, 1536, %s34, [#allocation6], 384, 384, 24
    $region13: #{tpu_custom_call.1} parent=1 // pred_fallthru
      _
    // Predicated region
    $region14: #{tpu_custom_call.1} parent=1 // pred_check
      _
    $region15: #{tpu_custom_call.1} parent=1 // pred_check_branch
      %41 = sbr.rel (0) target = $region17
    $region16: #{tpu_custom_call.1} parent=1 // pred_region
      %s43 = ssub.s32 6144, 6144
      %44 = vsyncadd [#allocation6], %s43
      %s45 = sshll.u32 [#allocation7], 4
      %s46 = int_to_ptr.vmem [resolvable:$true] %s45
      %51 = dma.hbm_to_vmem [thread:$0]  %s3, 6144, %s46, [#allocation6], 384, 384, 24
    $region17: #{tpu_custom_call.1} parent=1 // pred_fallthru
      _
    // Predicated region
    $region18: #{tpu_custom_call.1} parent=1 // pred_check
      _
    $region19: #{tpu_custom_call.1} parent=1 // pred_check_branch
      %53 = sbr.rel (0) target = $region21
    $region20: #{tpu_custom_call.1} parent=1 // pred_region
      _
    $region21: #{tpu_custom_call.1} parent=1 // pred_fallthru
      _
    // Predicated region
    $region22: #{tpu_custom_call.1} parent=1 // pred_check
      _
    $region23: #{tpu_custom_call.1} parent=1 // pred_check_branch
      %55 = sbr.rel (0) target = $region25
    $region24: #{tpu_custom_call.1} parent=1 // pred_region
      _
    $region25: #{tpu_custom_call.1} parent=1 // pred_fallthru
      _
    // Predicated region
    $region26: #{tpu_custom_call.1} parent=1 // pred_check
      _
    $region27: #{tpu_custom_call.1} parent=1 // pred_check_branch
      %57 = sbr.rel (0) target = $region29
    $region28: #{tpu_custom_call.1} parent=1 // pred_region
      %58 = dma.done [#allocation3], 384
    $region29: #{tpu_custom_call.1} parent=1 // pred_fallthru
      _
    // Predicated region
    $region30: #{tpu_custom_call.1} parent=1 // pred_check
      _
    $region31: #{tpu_custom_call.1} parent=1 // pred_check_branch
      %60 = sbr.rel (0) target = $region33
    $region32: #{tpu_custom_call.1} parent=1 // pred_region
      %61 = dma.done [#allocation6], 1536
    $region33: #{tpu_custom_call.1} parent=1 // pred_fallthru
      _
    // Predicated region
    $region34: #{tpu_custom_call.1} parent=1 // pred_check
      _
    $region35: #{tpu_custom_call.1} parent=1 // pred_check_branch
      %63 = sbr.rel (0) target = $region37
    $region36: #{tpu_custom_call.1} parent=1 // pred_region
      %64 = dma.done [#allocation6], 6144
    $region37: #{tpu_custom_call.1} parent=1 // pred_fallthru
      _
    %v65 = vld [vmem:[%s0] sm:$0xff]
    %v66 = vld [vmem:[%s0 + $0x8] sm:$0xff]
    %v67 = vlaneseq
    %v68 = vand.u32 %v67, 127
    %69 = vset.pattern.permute.xlu0 0
    %70 = vperm.xlu0 %69, %v65
    %v71 = vpop.permute.xlu0 %70
    %72 = vset.pattern.permute.xlu0 0
    %73 = vperm.xlu0 %72, %v66
    %v74 = vpop.permute.xlu0 %73
    %vm75 = vcmp.eq.s32.totalorder %v71, %v68
    %vm76 = vcmp.eq.s32.totalorder %v74, %v68
    %v77 = vsel %vm75, 1.0, 0.0
    %v78 = vsel %vm76, 1.0, 0.0
    %v79 = vld [vmem:[#allocation2] sm:$0xff]
    %v80 = vld [vmem:[#allocation2 + $0x8] sm:$0xff]
    %v81 = vld [vmem:[#allocation2 + $0x10] sm:$0xf]
    %vm82 = vcmask 162816
    %v84 = vsel %vm82, %v77, 0
    %v87 = vsel %vm82, %v78, 0
    %vm89 = vcmask 1043456
    %v91 = vsel %vm89, %v81, 0
    %93 = vmatprep.subr.mxu0 0.0
    %94 = vmatpush1.msra.mxu0 0.0
    %95 = vmatprep.subr.mxu0 0.0
    %96 = vmatpush1.msra.mxu0 0.0
    %97 = vmatprep.subr.mxu0 0.0
    %98 = vmatpush1.msra.mxu0 0.0
    %99 = vmatprep.subr.mxu0 0.0
    %100 = vmatpush1.msra.mxu0 0.0
    %101 = vmatprep.subr.mxu0 0.0
    %102 = vmatpush1.msra.mxu0 0.0
    %103 = vmatprep.subr.mxu0 0.0
    %104 = vmatpush1.msra.mxu0 0.0
    %105 = vmatprep.subr.mxu0 0.0
    %106 = vmatpush1.msra.mxu0 0.0
    %107 = vmatprep.subr.mxu0 0.0
    %108 = vmatpush1.msra.mxu0 0.0
    %109 = vmatprep.subr.mxu0 0.0
    %110 = vmatpush1.msra.mxu0 0.0
    %111 = vmatprep.subr.mxu0 0.0
    %112 = vmatpush1.msra.mxu0 0.0
    %113 = vmatprep.subr.mxu0 0.0
    %114 = vmatpush1.msra.mxu0 0.0
    %115 = vmatprep.subr.mxu0 0.0
    %116 = vmatpush1.msra.mxu0 0.0
    %117 = vmatprep.subr.mxu0 0.0
    %118 = vmatpush1.msra.mxu0 0.0
    %119 = vmatprep.subr.mxu0 0.0
    %120 = vmatpush1.msra.mxu0 %v91
    %121 = vmatprep.subr.mxu0 0.0
    %122 = vmatpush1.msra.mxu0 %v80
    %123 = vmatprep.subr.mxu0 0.0
    %124 = vmatpush1.msra.mxu0 %v79
    %125 = vmatprep.subr.mxu0 0.0
    %126 = vmatpush2.msra.mxu0 0.0
    %127 = vmatprep.subr.mxu0 0.0
    %128 = vmatpush2.msra.mxu0 0.0
    %129 = vmatprep.subr.mxu0 0.0
    %130 = vmatpush2.msra.mxu0 0.0
    %131 = vmatprep.subr.mxu0 0.0
    %132 = vmatpush2.msra.mxu0 0.0
    %133 = vmatprep.subr.mxu0 0.0
    %134 = vmatpush2.msra.mxu0 0.0
    %135 = vmatprep.subr.mxu0 0.0
    %136 = vmatpush2.msra.mxu0 0.0
    %137 = vmatprep.subr.mxu0 0.0
    %138 = vmatpush2.msra.mxu0 0.0
    %139 = vmatprep.subr.mxu0 0.0
    %140 = vmatpush2.msra.mxu0 0.0
    %141 = vmatprep.subr.mxu0 0.0
    %142 = vmatpush2.msra.mxu0 0.0
    %143 = vmatprep.subr.mxu0 0.0
    %144 = vmatpush2.msra.mxu0 0.0
    %145 = vmatprep.subr.mxu0 0.0
    %146 = vmatpush2.msra.mxu0 0.0
    %147 = vmatprep.subr.mxu0 0.0
    %148 = vmatpush2.msra.mxu0 0.0
    %149 = vmatprep.subr.mxu0 0.0
    %150 = vmatpush2.msra.mxu0 0.0
    %151 = vmatprep.subr.mxu0 0.0
    %152 = vmatpush2.msra.mxu0 0.0
    %153 = vmatprep.subr.mxu0 0.0
    %154 = vmatpush2.msra.mxu0 0.0
    %155 = vmatprep.subr.mxu0 0.0
    %156 = vmatpush2.msra.mxu0 0.0
    %157 = vmatprep.mubr.f32.mxu0 0.0
    %158 = vmatmul.mubr.f32.gmra.mxu0 %v84
    %v159 = vpop.f32.mrf.mxu0
    %v160 = vadd.f32 0.0, %v159
    %v161 = vpop.f32.mrf.mxu0
    %162 = vmatprep.mubr.f32.mxu0 0.0
    %163 = vmatmul.mubr.f32.gmra.mxu0 %v87
    %v164 = vpop.f32.mrf.mxu0
    %v165 = vadd.f32 0.0, %v164
    %v166 = vpop.f32.mrf.mxu0
    %167 = vdwg.mxu0
    %v168 = vld [vmem:[#allocation5] sm:$0xff]
    %v169 = vld [vmem:[#allocation5 + $0x8] sm:$0xff]
    %v170 = vld [vmem:[#allocation5 + $0x10] sm:$0xff]
    %v171 = vld [vmem:[#allocation5 + $0x18] sm:$0xff]
    %v172 = vld [vmem:[#allocation5 + $0x20] sm:$0xff]
    %v173 = vld [vmem:[#allocation5 + $0x28] sm:$0xff]
    %v174 = vld [vmem:[#allocation5 + $0x30] sm:$0xff]
    %v175 = vld [vmem:[#allocation5 + $0x38] sm:$0xff]
    %v176 = vld [vmem:[#allocation5 + $0x40] sm:$0xff]
    %v177 = vld [vmem:[#allocation5 + $0x48] sm:$0xff]
    %v178 = vld [vmem:[#allocation5 + $0x50] sm:$0xff]
    %v179 = vld [vmem:[#allocation5 + $0x58] sm:$0xff]
    %v180 = vld [vmem:[%s4] sm:$0x7]
    %v182 = vlaneseq
    %v183 = vshrl.u32 %v182, 7
    %v184 = vsub.s32 0, %v183
    %v185 = vrot.slane %v180, %v184
    %v186 = vlaneseq
    %v187 = vshrl.u32 %v186, 7
    %v188 = vsub.s32 1, %v187
    %v189 = vrot.slane %v180, %v188
    %v190 = vlaneseq
    %v191 = vshrl.u32 %v190, 7
    %v192 = vsub.s32 2, %v191
    %v193 = vrot.slane %v180, %v192
    %vm197 = vcmask 261120
    %v199 = vsel %vm197, %v160, 0
    %v202 = vsel %vm197, %v165, 0
    %204 = vmatprep.subr.mxu0 0.0
    %205 = vmatpush1.msra.mxu0 0.0
    %206 = vmatprep.subr.mxu0 0.0
    %207 = vmatpush1.msra.mxu0 0.0
    %208 = vmatprep.subr.mxu0 0.0
    %209 = vmatpush1.msra.mxu0 0.0
    %210 = vmatprep.subr.mxu0 0.0
    %211 = vmatpush1.msra.mxu0 0.0
    %212 = vmatprep.subr.mxu0 0.0
    %213 = vmatpush1.msra.mxu0 0.0
    %214 = vmatprep.subr.mxu0 0.0
    %215 = vmatpush1.msra.mxu0 0.0
    %216 = vmatprep.subr.mxu0 0.0
    %217 = vmatpush1.msra.mxu0 0.0
    %218 = vmatprep.subr.mxu0 0.0
    %219 = vmatpush1.msra.mxu0 0.0
    %220 = vmatprep.subr.mxu0 0.0
    %221 = vmatpush1.msra.mxu0 0.0
    %222 = vmatprep.subr.mxu0 0.0
    %223 = vmatpush1.msra.mxu0 0.0
    %224 = vmatprep.subr.mxu0 0.0
    %225 = vmatpush1.msra.mxu0 0.0
    %226 = vmatprep.subr.mxu0 0.0
    %227 = vmatpush1.msra.mxu0 0.0
    %228 = vmatprep.subr.mxu0 %v178
    %229 = vmatpush1.msra.mxu0 %v177
    %230 = vmatprep.subr.mxu0 %v175
    %231 = vmatpush1.msra.mxu0 %v174
    %232 = vmatprep.subr.mxu0 %v172
    %233 = vmatpush1.msra.mxu0 %v171
    %234 = vmatprep.subr.mxu0 %v169
    %235 = vmatpush1.msra.mxu0 %v168
    %236 = vmatprep.subr.mxu0 0.0
    %237 = vmatpush2.msra.mxu0 0.0
    %238 = vmatprep.subr.mxu0 0.0
    %239 = vmatpush2.msra.mxu0 0.0
    %240 = vmatprep.subr.mxu0 0.0
    %241 = vmatpush2.msra.mxu0 0.0
    %242 = vmatprep.subr.mxu0 0.0
    %243 = vmatpush2.msra.mxu0 0.0
    %244 = vmatprep.subr.mxu0 0.0
    %245 = vmatpush2.msra.mxu0 0.0
    %246 = vmatprep.subr.mxu0 0.0
    %247 = vmatpush2.msra.mxu0 0.0
    %248 = vmatprep.subr.mxu0 0.0
    %249 = vmatpush2.msra.mxu0 0.0
    %250 = vmatprep.subr.mxu0 0.0
    %251 = vmatpush2.msra.mxu0 0.0
    %252 = vmatprep.subr.mxu0 0.0
    %253 = vmatpush2.msra.mxu0 0.0
    %254 = vmatprep.subr.mxu0 0.0
    %255 = vmatpush2.msra.mxu0 0.0
    %256 = vmatprep.subr.mxu0 0.0
    %257 = vmatpush2.msra.mxu0 0.0
    %258 = vmatprep.subr.mxu0 0.0
    %259 = vmatpush2.msra.mxu0 0.0
    %260 = vmatprep.subr.mxu0 0.0
    %261 = vmatpush2.msra.mxu0 0.0
    %262 = vmatprep.subr.mxu0 0.0
    %263 = vmatpush2.msra.mxu0 0.0
    %264 = vmatprep.subr.mxu0 0.0
    %265 = vmatpush2.msra.mxu0 0.0
    %266 = vmatprep.subr.mxu0 0.0
    %267 = vmatpush2.msra.mxu0 0.0
    %268 = vmatprep.mubr.f32.mxu0 0.0
    %269 = vmatmul.mubr.f32.gmra.mxu0 %v199
    %v270 = vpop.f32.mrf.mxu0
    %v271 = vadd.f32 %v185, %v270
    %v272 = vpop.f32.mrf.mxu0
    %v273 = vadd.f32 %v189, %v272
    %274 = vmatprep.mubr.f32.mxu0 0.0
    %275 = vmatmul.mubr.f32.gmra.mxu0 %v202
    %v276 = vpop.f32.mrf.mxu0
    %v277 = vadd.f32 %v185, %v276
    %v278 = vpop.f32.mrf.mxu0
    %v279 = vadd.f32 %v189, %v278
    %280 = vdwg.mxu0
    %281 = vmatprep.subr.mxu0 0.0
    %282 = vmatpush1.msra.mxu0 0.0
    %283 = vmatprep.subr.mxu0 0.0
    %284 = vmatpush1.msra.mxu0 0.0
    %285 = vmatprep.subr.mxu0 0.0
    %286 = vmatpush1.msra.mxu0 0.0
    %287 = vmatprep.subr.mxu0 0.0
    %288 = vmatpush1.msra.mxu0 0.0
    %289 = vmatprep.subr.mxu0 0.0
    %290 = vmatpush1.msra.mxu0 0.0
    %291 = vmatprep.subr.mxu0 0.0
    %292 = vmatpush1.msra.mxu0 0.0
    %293 = vmatprep.subr.mxu0 0.0
    %294 = vmatpush1.msra.mxu0 0.0
    %295 = vmatprep.subr.mxu0 0.0
    %296 = vmatpush1.msra.mxu0 0.0
    %297 = vmatprep.subr.mxu0 0.0
    %298 = vmatpush1.msra.mxu0 0.0
    %299 = vmatprep.subr.mxu0 0.0
    %300 = vmatpush1.msra.mxu0 0.0
    %301 = vmatprep.subr.mxu0 0.0
    %302 = vmatpush1.msra.mxu0 0.0
    %303 = vmatprep.subr.mxu0 0.0
    %304 = vmatpush1.msra.mxu0 0.0
    %305 = vmatprep.subr.mxu0 0.0
    %306 = vmatpush1.msra.mxu0 %v179
    %307 = vmatprep.subr.mxu0 0.0
    %308 = vmatpush1.msra.mxu0 %v176
    %309 = vmatprep.subr.mxu0 0.0
    %310 = vmatpush1.msra.mxu0 %v173
    %311 = vmatprep.subr.mxu0 0.0
    %312 = vmatpush1.msra.mxu0 %v170
    %313 = vmatprep.subr.mxu0 0.0
    %314 = vmatpush2.msra.mxu0 0.0
    %315 = vmatprep.subr.mxu0 0.0
    %316 = vmatpush2.msra.mxu0 0.0
    %317 = vmatprep.subr.mxu0 0.0
    %318 = vmatpush2.msra.mxu0 0.0
    %319 = vmatprep.subr.mxu0 0.0
    %320 = vmatpush2.msra.mxu0 0.0
    %321 = vmatprep.subr.mxu0 0.0
    %322 = vmatpush2.msra.mxu0 0.0
    %323 = vmatprep.subr.mxu0 0.0
    %324 = vmatpush2.msra.mxu0 0.0
    %325 = vmatprep.subr.mxu0 0.0
    %326 = vmatpush2.msra.mxu0 0.0
    %327 = vmatprep.subr.mxu0 0.0
    %328 = vmatpush2.msra.mxu0 0.0
    %329 = vmatprep.subr.mxu0 0.0
    %330 = vmatpush2.msra.mxu0 0.0
    %331 = vmatprep.subr.mxu0 0.0
    %332 = vmatpush2.msra.mxu0 0.0
    %333 = vmatprep.subr.mxu0 0.0
    %334 = vmatpush2.msra.mxu0 0.0
    %335 = vmatprep.subr.mxu0 0.0
    %336 = vmatpush2.msra.mxu0 0.0
    %337 = vmatprep.subr.mxu0 0.0
    %338 = vmatpush2.msra.mxu0 0.0
    %339 = vmatprep.subr.mxu0 0.0
    %340 = vmatpush2.msra.mxu0 0.0
    %341 = vmatprep.subr.mxu0 0.0
    %342 = vmatpush2.msra.mxu0 0.0
    %343 = vmatprep.subr.mxu0 0.0
    %344 = vmatpush2.msra.mxu0 0.0
    %345 = vmatprep.mubr.f32.mxu0 0.0
    %346 = vmatmul.mubr.f32.gmra.mxu0 %v199
    %v347 = vpop.f32.mrf.mxu0
    %v348 = vadd.f32 %v193, %v347
    %v349 = vpop.f32.mrf.mxu0
    %350 = vmatprep.mubr.f32.mxu0 0.0
    %351 = vmatmul.mubr.f32.gmra.mxu0 %v202
    %v352 = vpop.f32.mrf.mxu0
    %v353 = vadd.f32 %v193, %v352
    %v354 = vpop.f32.mrf.mxu0
    %355 = vdwg.mxu0
    %v356 = vld [vmem:[#allocation7] sm:$0xff]
    %v357 = vld [vmem:[#allocation7 + $0x8] sm:$0xff]
    %v358 = vld [vmem:[#allocation7 + $0x10] sm:$0xff]
    %v359 = vld [vmem:[#allocation7 + $0x18] sm:$0xff]
    %v360 = vld [vmem:[#allocation7 + $0x20] sm:$0xff]
    %v361 = vld [vmem:[#allocation7 + $0x28] sm:$0xff]
    %v362 = vld [vmem:[#allocation7 + $0x30] sm:$0xff]
    %v363 = vld [vmem:[#allocation7 + $0x38] sm:$0xff]
    %v364 = vld [vmem:[#allocation7 + $0x40] sm:$0xff]
    %v365 = vld [vmem:[#allocation7 + $0x48] sm:$0xff]
    %v366 = vld [vmem:[#allocation7 + $0x50] sm:$0xff]
    %v367 = vld [vmem:[#allocation7 + $0x58] sm:$0xff]
    %v368 = vld [vmem:[#allocation7 + $0x60] sm:$0xff]
    %v369 = vld [vmem:[#allocation7 + $0x68] sm:$0xff]
    %v370 = vld [vmem:[#allocation7 + $0x70] sm:$0xff]
    %v371 = vld [vmem:[#allocation7 + $0x78] sm:$0xff]
    %v372 = vld [vmem:[#allocation7 + $0x80] sm:$0xff]
    %v373 = vld [vmem:[#allocation7 + $0x88] sm:$0xff]
    %v374 = vld [vmem:[#allocation7 + $0x90] sm:$0xff]
    %v375 = vld [vmem:[#allocation7 + $0x98] sm:$0xff]
    %v376 = vld [vmem:[#allocation7 + $0xa0] sm:$0xff]
    %v377 = vld [vmem:[#allocation7 + $0xa8] sm:$0xff]
    %v378 = vld [vmem:[#allocation7 + $0xb0] sm:$0xff]
    %v379 = vld [vmem:[#allocation7 + $0xb8] sm:$0xff]
    %v380 = vld [vmem:[#allocation7 + $0xc0] sm:$0xff]
    %v381 = vld [vmem:[#allocation7 + $0xc8] sm:$0xff]
    %v382 = vld [vmem:[#allocation7 + $0xd0] sm:$0xff]
    %v383 = vld [vmem:[#allocation7 + $0xd8] sm:$0xff]
    %v384 = vld [vmem:[#allocation7 + $0xe0] sm:$0xff]
    %v385 = vld [vmem:[#allocation7 + $0xe8] sm:$0xff]
    %v386 = vld [vmem:[#allocation7 + $0xf0] sm:$0xff]
    %v387 = vld [vmem:[#allocation7 + $0xf8] sm:$0xff]
    %v388 = vld [vmem:[#allocation7 + $0x100] sm:$0xff]
    %v389 = vld [vmem:[#allocation7 + $0x108] sm:$0xff]
    %v390 = vld [vmem:[#allocation7 + $0x110] sm:$0xff]
    %v391 = vld [vmem:[#allocation7 + $0x118] sm:$0xff]
    %v392 = vld [vmem:[#allocation7 + $0x120] sm:$0xff]
    %v393 = vld [vmem:[#allocation7 + $0x128] sm:$0xff]
    %v394 = vld [vmem:[#allocation7 + $0x130] sm:$0xff]
    %v395 = vld [vmem:[#allocation7 + $0x138] sm:$0xff]
    %v396 = vld [vmem:[#allocation7 + $0x140] sm:$0xff]
    %v397 = vld [vmem:[#allocation7 + $0x148] sm:$0xff]
    %v398 = vld [vmem:[#allocation7 + $0x150] sm:$0xff]
    %v399 = vld [vmem:[#allocation7 + $0x158] sm:$0xff]
    %v400 = vld [vmem:[#allocation7 + $0x160] sm:$0xff]
    %v401 = vld [vmem:[#allocation7 + $0x168] sm:$0xff]
    %v402 = vld [vmem:[#allocation7 + $0x170] sm:$0xff]
    %v403 = vld [vmem:[#allocation7 + $0x178] sm:$0xff]
    %v404 = vld [vmem:[%s5] sm:$0x1]
    %v406 = vlaneseq
    %v407 = vshrl.u32 %v406, 7
    %v408 = vsub.s32 0, %v407
    %v409 = vrot.slane %v404, %v408
    %411 = vmatprep.subr.mxu0 %v402
    %412 = vmatpush1.msra.mxu0 %v401
    %413 = vmatprep.subr.mxu0 %v399
    %414 = vmatpush1.msra.mxu0 %v398
    %415 = vmatprep.subr.mxu0 %v396
    %416 = vmatpush1.msra.mxu0 %v395
    %417 = vmatprep.subr.mxu0 %v393
    %418 = vmatpush1.msra.mxu0 %v392
    %419 = vmatprep.subr.mxu0 %v390
    %420 = vmatpush1.msra.mxu0 %v389
    %421 = vmatprep.subr.mxu0 %v387
    %422 = vmatpush1.msra.mxu0 %v386
    %423 = vmatprep.subr.mxu0 %v384
    %424 = vmatpush1.msra.mxu0 %v383
    %425 = vmatprep.subr.mxu0 %v381
    %426 = vmatpush1.msra.mxu0 %v380
    %427 = vmatprep.subr.mxu0 %v378
    %428 = vmatpush1.msra.mxu0 %v377
    %429 = vmatprep.subr.mxu0 %v375
    %430 = vmatpush1.msra.mxu0 %v374
    %431 = vmatprep.subr.mxu0 %v372
    %432 = vmatpush1.msra.mxu0 %v371
    %433 = vmatprep.subr.mxu0 %v369
    %434 = vmatpush1.msra.mxu0 %v368
    %435 = vmatprep.subr.mxu0 %v366
    %436 = vmatpush1.msra.mxu0 %v365
    %437 = vmatprep.subr.mxu0 %v363
    %438 = vmatpush1.msra.mxu0 %v362
    %439 = vmatprep.subr.mxu0 %v360
    %440 = vmatpush1.msra.mxu0 %v359
    %441 = vmatprep.subr.mxu0 %v357
    %442 = vmatpush1.msra.mxu0 %v356
    %443 = vmatprep.subr.mxu0 0.0
    %444 = vmatpush2.msra.mxu0 0.0
    %445 = vmatprep.subr.mxu0 0.0
    %446 = vmatpush2.msra.mxu0 0.0
    %447 = vmatprep.subr.mxu0 0.0
    %448 = vmatpush2.msra.mxu0 0.0
    %449 = vmatprep.subr.mxu0 0.0
    %450 = vmatpush2.msra.mxu0 0.0
    %451 = vmatprep.subr.mxu0 0.0
    %452 = vmatpush2.msra.mxu0 0.0
    %453 = vmatprep.subr.mxu0 0.0
    %454 = vmatpush2.msra.mxu0 0.0
    %455 = vmatprep.subr.mxu0 0.0
    %456 = vmatpush2.msra.mxu0 0.0
    %457 = vmatprep.subr.mxu0 0.0
    %458 = vmatpush2.msra.mxu0 0.0
    %459 = vmatprep.subr.mxu0 0.0
    %460 = vmatpush2.msra.mxu0 0.0
    %461 = vmatprep.subr.mxu0 0.0
    %462 = vmatpush2.msra.mxu0 0.0
    %463 = vmatprep.subr.mxu0 0.0
    %464 = vmatpush2.msra.mxu0 0.0
    %465 = vmatprep.subr.mxu0 0.0
    %466 = vmatpush2.msra.mxu0 0.0
    %467 = vmatprep.subr.mxu0 0.0
    %468 = vmatpush2.msra.mxu0 0.0
    %469 = vmatprep.subr.mxu0 0.0
    %470 = vmatpush2.msra.mxu0 0.0
    %471 = vmatprep.subr.mxu0 0.0
    %472 = vmatpush2.msra.mxu0 0.0
    %473 = vmatprep.subr.mxu0 0.0
    %474 = vmatpush2.msra.mxu0 0.0
    %475 = vmatprep.mubr.f32.mxu0 0.0
    %476 = vmatmul.mubr.f32.gmra.mxu0 0.0
    %v477 = vpop.f32.mrf.mxu0
    %v478 = vadd.f32 0.0, %v477
    %v479 = vpop.f32.mrf.mxu0
    %v480 = vadd.f32 0.0, %v479
    %481 = vdwg.mxu0
    %482 = vmatprep.subr.mxu0 0.0
    %483 = vmatpush1.msra.mxu0 %v403
    %484 = vmatprep.subr.mxu0 0.0
    %485 = vmatpush1.msra.mxu0 %v400
    %486 = vmatprep.subr.mxu0 0.0
    %487 = vmatpush1.msra.mxu0 %v397
    %488 = vmatprep.subr.mxu0 0.0
    %489 = vmatpush1.msra.mxu0 %v394
    %490 = vmatprep.subr.mxu0 0.0
    %491 = vmatpush1.msra.mxu0 %v391
    %492 = vmatprep.subr.mxu0 0.0
    %493 = vmatpush1.msra.mxu0 %v388
    %494 = vmatprep.subr.mxu0 0.0
    %495 = vmatpush1.msra.mxu0 %v385
    %496 = vmatprep.subr.mxu0 0.0
    %497 = vmatpush1.msra.mxu0 %v382
    %498 = vmatprep.subr.mxu0 0.0
    %499 = vmatpush1.msra.mxu0 %v379
    %500 = vmatprep.subr.mxu0 0.0
    %501 = vmatpush1.msra.mxu0 %v376
    %502 = vmatprep.subr.mxu0 0.0
    %503 = vmatpush1.msra.mxu0 %v373
    %504 = vmatprep.subr.mxu0 0.0
    %505 = vmatpush1.msra.mxu0 %v370
    %506 = vmatprep.subr.mxu0 0.0
    %507 = vmatpush1.msra.mxu0 %v367
    %508 = vmatprep.subr.mxu0 0.0
    %509 = vmatpush1.msra.mxu0 %v364
    %510 = vmatprep.subr.mxu0 0.0
    %511 = vmatpush1.msra.mxu0 %v361
    %512 = vmatprep.subr.mxu0 0.0
    %513 = vmatpush1.msra.mxu0 %v358
    %514 = vmatprep.subr.mxu0 0.0
    %515 = vmatpush2.msra.mxu0 0.0
    %516 = vmatprep.subr.mxu0 0.0
    %517 = vmatpush2.msra.mxu0 0.0
    %518 = vmatprep.subr.mxu0 0.0
    %519 = vmatpush2.msra.mxu0 0.0
    %520 = vmatprep.subr.mxu0 0.0
    %521 = vmatpush2.msra.mxu0 0.0
    %522 = vmatprep.subr.mxu0 0.0
    %523 = vmatpush2.msra.mxu0 0.0
    %524 = vmatprep.subr.mxu0 0.0
    %525 = vmatpush2.msra.mxu0 0.0
    %526 = vmatprep.subr.mxu0 0.0
    %527 = vmatpush2.msra.mxu0 0.0
    %528 = vmatprep.subr.mxu0 0.0
    %529 = vmatpush2.msra.mxu0 0.0
    %530 = vmatprep.subr.mxu0 0.0
    %531 = vmatpush2.msra.mxu0 0.0
    %532 = vmatprep.subr.mxu0 0.0
    %533 = vmatpush2.msra.mxu0 0.0
    %534 = vmatprep.subr.mxu0 0.0
    %535 = vmatpush2.msra.mxu0 0.0
    %536 = vmatprep.subr.mxu0 0.0
    %537 = vmatpush2.msra.mxu0 0.0
    %538 = vmatprep.subr.mxu0 0.0
    %539 = vmatpush2.msra.mxu0 0.0
    %540 = vmatprep.subr.mxu0 0.0
    %541 = vmatpush2.msra.mxu0 0.0
    %542 = vmatprep.subr.mxu0 0.0
    %543 = vmatpush2.msra.mxu0 0.0
    %544 = vmatprep.subr.mxu0 0.0
    %545 = vmatpush2.msra.mxu0 0.0
    %546 = vmatprep.mubr.f32.mxu0 0.0
    %547 = vmatmul.mubr.f32.gmra.mxu0 0.0
    %v548 = vpop.f32.mrf.mxu0
    %v549 = vadd.f32 0.0, %v548
    %v550 = vpop.f32.mrf.mxu0
    %551 = vdwg.mxu0
    %v552 = vadd.f32 %v271, %v478
    %v553 = vxor.u32 %v552, 2147483648
    %v554 = vmul.f32 %v553, 1.442695
    %v555 = vpow.pop %v554
    %v556 = vadd.f32 %v555, 1.0
    %v557 = vrcp.pop %v556
    %v558 = vmul.f32 1.0, %v557
    %v559 = vadd.f32 %v273, %v480
    %v560 = vxor.u32 %v559, 2147483648
    %v561 = vmul.f32 %v560, 1.442695
    %v562 = vpow.pop %v561
    %v563 = vadd.f32 %v562, 1.0
    %v564 = vrcp.pop %v563
    %v565 = vmul.f32 1.0, %v564
    %v566 = vadd.f32 %v549, %v409
    %v567 = vmul.f32 %v558, %v566
    %v568 = vadd.f32 %v348, %v567
    %v569 = vtanh.pop %v568
    %v570 = vsub.f32 0.0, %v569
    %v571 = vmul.f32 %v565, %v570
    %v572 = vadd.f32 %v569, %v571
    %v575 = vunpack.c.l.s4 1966171168
    %v576 = vunpack.c.0.s8 %v575
    %v577 = vlaneseq
    %v578 = vshrl.u32 %v577, 7
    %v579 = vsub.s32 %v576, %v578
    %v580 = vrot.slane %v572, %v579
    %v581 = vcombine.high %v580, %v580
    %v583 = vunpack.c.l.s4 1966171168
    %v584 = vunpack.c.0.s8 %v583
    %v585 = vlaneseq
    %v586 = vshrl.u32 %v585, 7
    %v587 = vsub.s32 %v584, %v586
    %v588 = vrot.slane %v580, %v587
    %v590 = vunpack.c.l.s4 1966171168
    %v591 = vunpack.c.0.s8 %v590
    %v592 = vlaneseq
    %v593 = vshrl.u32 %v592, 7
    %v594 = vsub.s32 %v591, %v593
    %v595 = vrot.slane %v581, %v594
    %vm598 = vcmask 253952
    %599 = vst.msk [vmem:[#allocation8] sm:$0x1] %vm598, %v588
    %600 = vst.msk [vmem:[#allocation8 + $0x8] sm:$0x1] %vm598, %v595
    %601 = vmatprep.subr.mxu0 %v402
    %602 = vmatpush1.msra.mxu0 %v401
    %603 = vmatprep.subr.mxu0 %v399
    %604 = vmatpush1.msra.mxu0 %v398
    %605 = vmatprep.subr.mxu0 %v396
    %606 = vmatpush1.msra.mxu0 %v395
    %607 = vmatprep.subr.mxu0 %v393
    %608 = vmatpush1.msra.mxu0 %v392
    %609 = vmatprep.subr.mxu0 %v390
    %610 = vmatpush1.msra.mxu0 %v389
    %611 = vmatprep.subr.mxu0 %v387
    %612 = vmatpush1.msra.mxu0 %v386
    %613 = vmatprep.subr.mxu0 %v384
    %614 = vmatpush1.msra.mxu0 %v383
    %615 = vmatprep.subr.mxu0 %v381
    %616 = vmatpush1.msra.mxu0 %v380
    %617 = vmatprep.subr.mxu0 %v378
    %618 = vmatpush1.msra.mxu0 %v377
    %619 = vmatprep.subr.mxu0 %v375
    %620 = vmatpush1.msra.mxu0 %v374
    %621 = vmatprep.subr.mxu0 %v372
    %622 = vmatpush1.msra.mxu0 %v371
    %623 = vmatprep.subr.mxu0 %v369
    %624 = vmatpush1.msra.mxu0 %v368
    %625 = vmatprep.subr.mxu0 %v366
    %626 = vmatpush1.msra.mxu0 %v365
    %627 = vmatprep.subr.mxu0 %v363
    %628 = vmatpush1.msra.mxu0 %v362
    %629 = vmatprep.subr.mxu0 %v360
    %630 = vmatpush1.msra.mxu0 %v359
    %631 = vmatprep.subr.mxu0 %v357
    %632 = vmatpush1.msra.mxu0 %v356
    %633 = vmatprep.subr.mxu0 0.0
    %634 = vmatpush2.msra.mxu0 0.0
    %635 = vmatprep.subr.mxu0 0.0
    %636 = vmatpush2.msra.mxu0 0.0
    %637 = vmatprep.subr.mxu0 0.0
    %638 = vmatpush2.msra.mxu0 0.0
    %639 = vmatprep.subr.mxu0 0.0
    %640 = vmatpush2.msra.mxu0 0.0
    %641 = vmatprep.subr.mxu0 0.0
    %642 = vmatpush2.msra.mxu0 0.0
    %643 = vmatprep.subr.mxu0 0.0
    %644 = vmatpush2.msra.mxu0 0.0
    %645 = vmatprep.subr.mxu0 0.0
    %646 = vmatpush2.msra.mxu0 0.0
    %647 = vmatprep.subr.mxu0 0.0
    %648 = vmatpush2.msra.mxu0 0.0
    %649 = vmatprep.subr.mxu0 0.0
    %650 = vmatpush2.msra.mxu0 0.0
    %651 = vmatprep.subr.mxu0 0.0
    %652 = vmatpush2.msra.mxu0 0.0
    %653 = vmatprep.subr.mxu0 0.0
    %654 = vmatpush2.msra.mxu0 0.0
    %655 = vmatprep.subr.mxu0 0.0
    %656 = vmatpush2.msra.mxu0 0.0
    %657 = vmatprep.subr.mxu0 0.0
    %658 = vmatpush2.msra.mxu0 0.0
    %659 = vmatprep.subr.mxu0 0.0
    %660 = vmatpush2.msra.mxu0 0.0
    %661 = vmatprep.subr.mxu0 0.0
    %662 = vmatpush2.msra.mxu0 0.0
    %663 = vmatprep.subr.mxu0 0.0
    %664 = vmatpush2.msra.mxu0 0.0
    %665 = vmatprep.mubr.f32.mxu0 0.0
    %666 = vmatmul.mubr.f32.gmra.mxu0 %v572
    %v667 = vpop.f32.mrf.mxu0
    %v668 = vadd.f32 0.0, %v667
    %v669 = vpop.f32.mrf.mxu0
    %v670 = vadd.f32 0.0, %v669
    %671 = vdwg.mxu0
    %672 = vmatprep.subr.mxu0 0.0
    %673 = vmatpush1.msra.mxu0 %v403
    %674 = vmatprep.subr.mxu0 0.0
    %675 = vmatpush1.msra.mxu0 %v400
    %676 = vmatprep.subr.mxu0 0.0
    %677 = vmatpush1.msra.mxu0 %v397
    %678 = vmatprep.subr.mxu0 0.0
    %679 = vmatpush1.msra.mxu0 %v394
    %680 = vmatprep.subr.mxu0 0.0
    %681 = vmatpush1.msra.mxu0 %v391
    %682 = vmatprep.subr.mxu0 0.0
    %683 = vmatpush1.msra.mxu0 %v388
    %684 = vmatprep.subr.mxu0 0.0
    %685 = vmatpush1.msra.mxu0 %v385
    %686 = vmatprep.subr.mxu0 0.0
    %687 = vmatpush1.msra.mxu0 %v382
    %688 = vmatprep.subr.mxu0 0.0
    %689 = vmatpush1.msra.mxu0 %v379
    %690 = vmatprep.subr.mxu0 0.0
    %691 = vmatpush1.msra.mxu0 %v376
    %692 = vmatprep.subr.mxu0 0.0
    %693 = vmatpush1.msra.mxu0 %v373
    %694 = vmatprep.subr.mxu0 0.0
    %695 = vmatpush1.msra.mxu0 %v370
    %696 = vmatprep.subr.mxu0 0.0
    %697 = vmatpush1.msra.mxu0 %v367
    %698 = vmatprep.subr.mxu0 0.0
    %699 = vmatpush1.msra.mxu0 %v364
    %700 = vmatprep.subr.mxu0 0.0
    %701 = vmatpush1.msra.mxu0 %v361
    %702 = vmatprep.subr.mxu0 0.0
    %703 = vmatpush1.msra.mxu0 %v358
    %704 = vmatprep.subr.mxu0 0.0
    %705 = vmatpush2.msra.mxu0 0.0
    %706 = vmatprep.subr.mxu0 0.0
    %707 = vmatpush2.msra.mxu0 0.0
    %708 = vmatprep.subr.mxu0 0.0
    %709 = vmatpush2.msra.mxu0 0.0
    %710 = vmatprep.subr.mxu0 0.0
    %711 = vmatpush2.msra.mxu0 0.0
    %712 = vmatprep.subr.mxu0 0.0
    %713 = vmatpush2.msra.mxu0 0.0
    %714 = vmatprep.subr.mxu0 0.0
    %715 = vmatpush2.msra.mxu0 0.0
    %716 = vmatprep.subr.mxu0 0.0
    %717 = vmatpush2.msra.mxu0 0.0
    %718 = vmatprep.subr.mxu0 0.0
    %719 = vmatpush2.msra.mxu0 0.0
    %720 = vmatprep.subr.mxu0 0.0
    %721 = vmatpush2.msra.mxu0 0.0
    %722 = vmatprep.subr.mxu0 0.0
    %723 = vmatpush2.msra.mxu0 0.0
    %724 = vmatprep.subr.mxu0 0.0
    %725 = vmatpush2.msra.mxu0 0.0
    %726 = vmatprep.subr.mxu0 0.0
    %727 = vmatpush2.msra.mxu0 0.0
    %728 = vmatprep.subr.mxu0 0.0
    %729 = vmatpush2.msra.mxu0 0.0
    %730 = vmatprep.subr.mxu0 0.0
    %731 = vmatpush2.msra.mxu0 0.0
    %732 = vmatprep.subr.mxu0 0.0
    %733 = vmatpush2.msra.mxu0 0.0
    %734 = vmatprep.subr.mxu0 0.0
    %735 = vmatpush2.msra.mxu0 0.0
    %736 = vmatprep.mubr.f32.mxu0 0.0
    %737 = vmatmul.mubr.f32.gmra.mxu0 %v572
    %v738 = vpop.f32.mrf.mxu0
    %v739 = vadd.f32 0.0, %v738
    %v740 = vpop.f32.mrf.mxu0
    %741 = vdwg.mxu0
    %v743 = vrot.slane %v668, 6
    %v745 = vadd.f32 %v271, %v743
    %v746 = vxor.u32 %v745, 2147483648
    %v747 = vmul.f32 %v746, 1.442695
    %v748 = vpow.pop %v747
    %v749 = vadd.f32 %v748, 1.0
    %v750 = vrcp.pop %v749
    %v751 = vmul.f32 1.0, %v750
    %v753 = vrot.slane %v670, 6
    %v755 = vadd.f32 %v273, %v753
    %v756 = vxor.u32 %v755, 2147483648
    %v757 = vmul.f32 %v756, 1.442695
    %v758 = vpow.pop %v757
    %v759 = vadd.f32 %v758, 1.0
    %v760 = vrcp.pop %v759
    %v761 = vmul.f32 1.0, %v760
    %v762 = vadd.f32 %v739, %v409
    %v764 = vrot.slane %v762, 6
    %v766 = vmul.f32 %v751, %v764
    %v767 = vadd.f32 %v348, %v766
    %v768 = vtanh.pop %v767
    %v770 = vrot.slane %v768, 2
    %v772 = vsub.f32 %v572, %v770
    %v774 = vrot.slane %v772, 6
    %v776 = vmul.f32 %v761, %v774
    %v777 = vadd.f32 %v768, %v776
    %v780 = vunpack.c.l.s4 1966171168
    %v781 = vunpack.c.0.s8 %v780
    %v782 = vlaneseq
    %v783 = vshrl.u32 %v782, 7
    %v784 = vsub.s32 %v781, %v783
    %v785 = vrot.slane %v777, %v784
    %v786 = vcombine.high %v785, %v785
    %v788 = vunpack.c.l.s4 1966171168
    %v789 = vunpack.c.0.s8 %v788
    %v790 = vlaneseq
    %v791 = vshrl.u32 %v790, 7
    %v792 = vsub.s32 %v789, %v791
    %v793 = vrot.slane %v785, %v792
    %v795 = vunpack.c.l.s4 1966171168
    %v796 = vunpack.c.0.s8 %v795
    %v797 = vlaneseq
    %v798 = vshrl.u32 %v797, 7
    %v799 = vsub.s32 %v796, %v798
    %v800 = vrot.slane %v786, %v799
    %v801 = vcombine.high %v793, %v793
    %v802 = vcombine.high %v800, %v800
    %805 = vst.msk [vmem:[#allocation8 + $0x1] sm:$0x1] %vm598, %v801
    %806 = vst.msk [vmem:[#allocation8 + $0x9] sm:$0x1] %vm598, %v802
    %v807 = vrot.slane %v777, 2
    %809 = vmatprep.subr.mxu0 %v402
    %810 = vmatpush1.msra.mxu0 %v401
    %811 = vmatprep.subr.mxu0 %v399
    %812 = vmatpush1.msra.mxu0 %v398
    %813 = vmatprep.subr.mxu0 %v396
    %814 = vmatpush1.msra.mxu0 %v395
    %815 = vmatprep.subr.mxu0 %v393
    %816 = vmatpush1.msra.mxu0 %v392
    %817 = vmatprep.subr.mxu0 %v390
    %818 = vmatpush1.msra.mxu0 %v389
    %819 = vmatprep.subr.mxu0 %v387
    %820 = vmatpush1.msra.mxu0 %v386
    %821 = vmatprep.subr.mxu0 %v384
    %822 = vmatpush1.msra.mxu0 %v383
    %823 = vmatprep.subr.mxu0 %v381
    %824 = vmatpush1.msra.mxu0 %v380
    %825 = vmatprep.subr.mxu0 %v378
    %826 = vmatpush1.msra.mxu0 %v377
    %827 = vmatprep.subr.mxu0 %v375
    %828 = vmatpush1.msra.mxu0 %v374
    %829 = vmatprep.subr.mxu0 %v372
    %830 = vmatpush1.msra.mxu0 %v371
    %831 = vmatprep.subr.mxu0 %v369
    %832 = vmatpush1.msra.mxu0 %v368
    %833 = vmatprep.subr.mxu0 %v366
    %834 = vmatpush1.msra.mxu0 %v365
    %835 = vmatprep.subr.mxu0 %v363
    %836 = vmatpush1.msra.mxu0 %v362
    %837 = vmatprep.subr.mxu0 %v360
    %838 = vmatpush1.msra.mxu0 %v359
    %839 = vmatprep.subr.mxu0 %v357
    %840 = vmatpush1.msra.mxu0 %v356
    %841 = vmatprep.subr.mxu0 0.0
    %842 = vmatpush2.msra.mxu0 0.0
    %843 = vmatprep.subr.mxu0 0.0
    %844 = vmatpush2.msra.mxu0 0.0
    %845 = vmatprep.subr.mxu0 0.0
    %846 = vmatpush2.msra.mxu0 0.0
    %847 = vmatprep.subr.mxu0 0.0
    %848 = vmatpush2.msra.mxu0 0.0
    %849 = vmatprep.subr.mxu0 0.0
    %850 = vmatpush2.msra.mxu0 0.0
    %851 = vmatprep.subr.mxu0 0.0
    %852 = vmatpush2.msra.mxu0 0.0
    %853 = vmatprep.subr.mxu0 0.0
    %854 = vmatpush2.msra.mxu0 0.0
    %855 = vmatprep.subr.mxu0 0.0
    %856 = vmatpush2.msra.mxu0 0.0
    %857 = vmatprep.subr.mxu0 0.0
    %858 = vmatpush2.msra.mxu0 0.0
    %859 = vmatprep.subr.mxu0 0.0
    %860 = vmatpush2.msra.mxu0 0.0
    %861 = vmatprep.subr.mxu0 0.0
    %862 = vmatpush2.msra.mxu0 0.0
    %863 = vmatprep.subr.mxu0 0.0
    %864 = vmatpush2.msra.mxu0 0.0
    %865 = vmatprep.subr.mxu0 0.0
    %866 = vmatpush2.msra.mxu0 0.0
    %867 = vmatprep.subr.mxu0 0.0
    %868 = vmatpush2.msra.mxu0 0.0
    %869 = vmatprep.subr.mxu0 0.0
    %870 = vmatpush2.msra.mxu0 0.0
    %871 = vmatprep.subr.mxu0 0.0
    %872 = vmatpush2.msra.mxu0 0.0
    %873 = vmatprep.mubr.f32.mxu0 0.0
    %874 = vmatmul.mubr.f32.gmra.mxu0 %v807
    %v875 = vpop.f32.mrf.mxu0
    %v876 = vadd.f32 0.0, %v875
    %v877 = vpop.f32.mrf.mxu0
    %v878 = vadd.f32 0.0, %v877
    %879 = vdwg.mxu0
    %880 = vmatprep.subr.mxu0 0.0
    %881 = vmatpush1.msra.mxu0 %v403
    %882 = vmatprep.subr.mxu0 0.0
    %883 = vmatpush1.msra.mxu0 %v400
    %884 = vmatprep.subr.mxu0 0.0
    %885 = vmatpush1.msra.mxu0 %v397
    %886 = vmatprep.subr.mxu0 0.0
    %887 = vmatpush1.msra.mxu0 %v394
    %888 = vmatprep.subr.mxu0 0.0
    %889 = vmatpush1.msra.mxu0 %v391
    %890 = vmatprep.subr.mxu0 0.0
    %891 = vmatpush1.msra.mxu0 %v388
    %892 = vmatprep.subr.mxu0 0.0
    %893 = vmatpush1.msra.mxu0 %v385
    %894 = vmatprep.subr.mxu0 0.0
    %895 = vmatpush1.msra.mxu0 %v382
    %896 = vmatprep.subr.mxu0 0.0
    %897 = vmatpush1.msra.mxu0 %v379
    %898 = vmatprep.subr.mxu0 0.0
    %899 = vmatpush1.msra.mxu0 %v376
    %900 = vmatprep.subr.mxu0 0.0
    %901 = vmatpush1.msra.mxu0 %v373
    %902 = vmatprep.subr.mxu0 0.0
    %903 = vmatpush1.msra.mxu0 %v370
    %904 = vmatprep.subr.mxu0 0.0
    %905 = vmatpush1.msra.mxu0 %v367
    %906 = vmatprep.subr.mxu0 0.0
    %907 = vmatpush1.msra.mxu0 %v364
    %908 = vmatprep.subr.mxu0 0.0
    %909 = vmatpush1.msra.mxu0 %v361
    %910 = vmatprep.subr.mxu0 0.0
    %911 = vmatpush1.msra.mxu0 %v358
    %912 = vmatprep.subr.mxu0 0.0
    %913 = vmatpush2.msra.mxu0 0.0
    %914 = vmatprep.subr.mxu0 0.0
    %915 = vmatpush2.msra.mxu0 0.0
    %916 = vmatprep.subr.mxu0 0.0
    %917 = vmatpush2.msra.mxu0 0.0
    %918 = vmatprep.subr.mxu0 0.0
    %919 = vmatpush2.msra.mxu0 0.0
    %920 = vmatprep.subr.mxu0 0.0
    %921 = vmatpush2.msra.mxu0 0.0
    %922 = vmatprep.subr.mxu0 0.0
    %923 = vmatpush2.msra.mxu0 0.0
    %924 = vmatprep.subr.mxu0 0.0
    %925 = vmatpush2.msra.mxu0 0.0
    %926 = vmatprep.subr.mxu0 0.0
    %927 = vmatpush2.msra.mxu0 0.0
    %928 = vmatprep.subr.mxu0 0.0
    %929 = vmatpush2.msra.mxu0 0.0
    %930 = vmatprep.subr.mxu0 0.0
    %931 = vmatpush2.msra.mxu0 0.0
    %932 = vmatprep.subr.mxu0 0.0
    %933 = vmatpush2.msra.mxu0 0.0
    %934 = vmatprep.subr.mxu0 0.0
    %935 = vmatpush2.msra.mxu0 0.0
    %936 = vmatprep.subr.mxu0 0.0
    %937 = vmatpush2.msra.mxu0 0.0
    %938 = vmatprep.subr.mxu0 0.0
    %939 = vmatpush2.msra.mxu0 0.0
    %940 = vmatprep.subr.mxu0 0.0
    %941 = vmatpush2.msra.mxu0 0.0
    %942 = vmatprep.subr.mxu0 0.0
    %943 = vmatpush2.msra.mxu0 0.0
    %944 = vmatprep.mubr.f32.mxu0 0.0
    %945 = vmatmul.mubr.f32.gmra.mxu0 %v807
    %v946 = vpop.f32.mrf.mxu0
    %v947 = vadd.f32 0.0, %v946
    %v948 = vpop.f32.mrf.mxu0
    %949 = vdwg.mxu0
    %v951 = vrot.slane %v876, 4
    %v953 = vadd.f32 %v271, %v951
    %v954 = vxor.u32 %v953, 2147483648
    %v955 = vmul.f32 %v954, 1.442695
    %v956 = vpow.pop %v955
    %v957 = vadd.f32 %v956, 1.0
    %v958 = vrcp.pop %v957
    %v959 = vmul.f32 1.0, %v958
    %v961 = vrot.slane %v878, 4
    %v963 = vadd.f32 %v273, %v961
    %v964 = vxor.u32 %v963, 2147483648
    %v965 = vmul.f32 %v964, 1.442695
    %v966 = vpow.pop %v965
    %v967 = vadd.f32 %v966, 1.0
    %v968 = vrcp.pop %v967
    %v969 = vmul.f32 1.0, %v968
    %v970 = vadd.f32 %v947, %v409
    %v972 = vrot.slane %v970, 4
    %v974 = vmul.f32 %v959, %v972
    %v975 = vadd.f32 %v348, %v974
    %v976 = vtanh.pop %v975
    %v978 = vrot.slane %v976, 2
    %v980 = vsub.f32 %v777, %v978
    %v982 = vrot.slane %v980, 6
    %v984 = vmul.f32 %v969, %v982
    %v985 = vadd.f32 %v976, %v984
    %v987 = vcombine.high %v985, %v985
    %v989 = vunpack.c.l.s4 1966171168
    %v990 = vunpack.c.0.s8 %v989
    %v991 = vlaneseq
    %v992 = vshrl.u32 %v991, 7
    %v993 = vsub.s32 %v990, %v992
    %v994 = vrot.slane %v987, %v993
    %v995 = vcombine.high %v994, %v994
    %v997 = vunpack.c.l.s4 1966171168
    %v998 = vunpack.c.0.s8 %v997
    %v999 = vlaneseq
    %v1000 = vshrl.u32 %v999, 7
    %v1001 = vsub.s32 %v998, %v1000
    %v1002 = vrot.slane %v994, %v1001
    %v1004 = vunpack.c.l.s4 1966171168
    %v1005 = vunpack.c.0.s8 %v1004
    %v1006 = vlaneseq
    %v1007 = vshrl.u32 %v1006, 7
    %v1008 = vsub.s32 %v1005, %v1007
    %v1009 = vrot.slane %v995, %v1008
    %1012 = vst.msk [vmem:[#allocation8 + $0x2] sm:$0x1] %vm598, %v1002
    %1013 = vst.msk [vmem:[#allocation8 + $0xa] sm:$0x1] %vm598, %v1009
    %v1014 = vrot.slane %v985, 4
    %1016 = vmatprep.subr.mxu0 %v402
    %1017 = vmatpush1.msra.mxu0 %v401
    %1018 = vmatprep.subr.mxu0 %v399
    %1019 = vmatpush1.msra.mxu0 %v398
    %1020 = vmatprep.subr.mxu0 %v396
    %1021 = vmatpush1.msra.mxu0 %v395
    %1022 = vmatprep.subr.mxu0 %v393
    %1023 = vmatpush1.msra.mxu0 %v392
    %1024 = vmatprep.subr.mxu0 %v390
    %1025 = vmatpush1.msra.mxu0 %v389
    %1026 = vmatprep.subr.mxu0 %v387
    %1027 = vmatpush1.msra.mxu0 %v386
    %1028 = vmatprep.subr.mxu0 %v384
    %1029 = vmatpush1.msra.mxu0 %v383
    %1030 = vmatprep.subr.mxu0 %v381
    %1031 = vmatpush1.msra.mxu0 %v380
    %1032 = vmatprep.subr.mxu0 %v378
    %1033 = vmatpush1.msra.mxu0 %v377
    %1034 = vmatprep.subr.mxu0 %v375
    %1035 = vmatpush1.msra.mxu0 %v374
    %1036 = vmatprep.subr.mxu0 %v372
    %1037 = vmatpush1.msra.mxu0 %v371
    %1038 = vmatprep.subr.mxu0 %v369
    %1039 = vmatpush1.msra.mxu0 %v368
    %1040 = vmatprep.subr.mxu0 %v366
    %1041 = vmatpush1.msra.mxu0 %v365
    %1042 = vmatprep.subr.mxu0 %v363
    %1043 = vmatpush1.msra.mxu0 %v362
    %1044 = vmatprep.subr.mxu0 %v360
    %1045 = vmatpush1.msra.mxu0 %v359
    %1046 = vmatprep.subr.mxu0 %v357
    %1047 = vmatpush1.msra.mxu0 %v356
    %1048 = vmatprep.subr.mxu0 0.0
    %1049 = vmatpush2.msra.mxu0 0.0
    %1050 = vmatprep.subr.mxu0 0.0
    %1051 = vmatpush2.msra.mxu0 0.0
    %1052 = vmatprep.subr.mxu0 0.0
    %1053 = vmatpush2.msra.mxu0 0.0
    %1054 = vmatprep.subr.mxu0 0.0
    %1055 = vmatpush2.msra.mxu0 0.0
    %1056 = vmatprep.subr.mxu0 0.0
    %1057 = vmatpush2.msra.mxu0 0.0
    %1058 = vmatprep.subr.mxu0 0.0
    %1059 = vmatpush2.msra.mxu0 0.0
    %1060 = vmatprep.subr.mxu0 0.0
    %1061 = vmatpush2.msra.mxu0 0.0
    %1062 = vmatprep.subr.mxu0 0.0
    %1063 = vmatpush2.msra.mxu0 0.0
    %1064 = vmatprep.subr.mxu0 0.0
    %1065 = vmatpush2.msra.mxu0 0.0
    %1066 = vmatprep.subr.mxu0 0.0
    %1067 = vmatpush2.msra.mxu0 0.0
    %1068 = vmatprep.subr.mxu0 0.0
    %1069 = vmatpush2.msra.mxu0 0.0
    %1070 = vmatprep.subr.mxu0 0.0
    %1071 = vmatpush2.msra.mxu0 0.0
    %1072 = vmatprep.subr.mxu0 0.0
    %1073 = vmatpush2.msra.mxu0 0.0
    %1074 = vmatprep.subr.mxu0 0.0
    %1075 = vmatpush2.msra.mxu0 0.0
    %1076 = vmatprep.subr.mxu0 0.0
    %1077 = vmatpush2.msra.mxu0 0.0
    %1078 = vmatprep.subr.mxu0 0.0
    %1079 = vmatpush2.msra.mxu0 0.0
    %1080 = vmatprep.mubr.f32.mxu0 0.0
    %1081 = vmatmul.mubr.f32.gmra.mxu0 %v1014
    %v1082 = vpop.f32.mrf.mxu0
    %v1083 = vadd.f32 0.0, %v1082
    %v1084 = vpop.f32.mrf.mxu0
    %v1085 = vadd.f32 0.0, %v1084
    %1086 = vdwg.mxu0
    %1087 = vmatprep.subr.mxu0 0.0
    %1088 = vmatpush1.msra.mxu0 %v403
    %1089 = vmatprep.subr.mxu0 0.0
    %1090 = vmatpush1.msra.mxu0 %v400
    %1091 = vmatprep.subr.mxu0 0.0
    %1092 = vmatpush1.msra.mxu0 %v397
    %1093 = vmatprep.subr.mxu0 0.0
    %1094 = vmatpush1.msra.mxu0 %v394
    %1095 = vmatprep.subr.mxu0 0.0
    %1096 = vmatpush1.msra.mxu0 %v391
    %1097 = vmatprep.subr.mxu0 0.0
    %1098 = vmatpush1.msra.mxu0 %v388
    %1099 = vmatprep.subr.mxu0 0.0
    %1100 = vmatpush1.msra.mxu0 %v385
    %1101 = vmatprep.subr.mxu0 0.0
    %1102 = vmatpush1.msra.mxu0 %v382
    %1103 = vmatprep.subr.mxu0 0.0
    %1104 = vmatpush1.msra.mxu0 %v379
    %1105 = vmatprep.subr.mxu0 0.0
    %1106 = vmatpush1.msra.mxu0 %v376
    %1107 = vmatprep.subr.mxu0 0.0
    %1108 = vmatpush1.msra.mxu0 %v373
    %1109 = vmatprep.subr.mxu0 0.0
    %1110 = vmatpush1.msra.mxu0 %v370
    %1111 = vmatprep.subr.mxu0 0.0
    %1112 = vmatpush1.msra.mxu0 %v367
    %1113 = vmatprep.subr.mxu0 0.0
    %1114 = vmatpush1.msra.mxu0 %v364
    %1115 = vmatprep.subr.mxu0 0.0
    %1116 = vmatpush1.msra.mxu0 %v361
    %1117 = vmatprep.subr.mxu0 0.0
    %1118 = vmatpush1.msra.mxu0 %v358
    %1119 = vmatprep.subr.mxu0 0.0
    %1120 = vmatpush2.msra.mxu0 0.0
    %1121 = vmatprep.subr.mxu0 0.0
    %1122 = vmatpush2.msra.mxu0 0.0
    %1123 = vmatprep.subr.mxu0 0.0
    %1124 = vmatpush2.msra.mxu0 0.0
    %1125 = vmatprep.subr.mxu0 0.0
    %1126 = vmatpush2.msra.mxu0 0.0
    %1127 = vmatprep.subr.mxu0 0.0
    %1128 = vmatpush2.msra.mxu0 0.0
    %1129 = vmatprep.subr.mxu0 0.0
    %1130 = vmatpush2.msra.mxu0 0.0
    %1131 = vmatprep.subr.mxu0 0.0
    %1132 = vmatpush2.msra.mxu0 0.0
    %1133 = vmatprep.subr.mxu0 0.0
    %1134 = vmatpush2.msra.mxu0 0.0
    %1135 = vmatprep.subr.mxu0 0.0
    %1136 = vmatpush2.msra.mxu0 0.0
    %1137 = vmatprep.subr.mxu0 0.0
    %1138 = vmatpush2.msra.mxu0 0.0
    %1139 = vmatprep.subr.mxu0 0.0
    %1140 = vmatpush2.msra.mxu0 0.0
    %1141 = vmatprep.subr.mxu0 0.0
    %1142 = vmatpush2.msra.mxu0 0.0
    %1143 = vmatprep.subr.mxu0 0.0
    %1144 = vmatpush2.msra.mxu0 0.0
    %1145 = vmatprep.subr.mxu0 0.0
    %1146 = vmatpush2.msra.mxu0 0.0
    %1147 = vmatprep.subr.mxu0 0.0
    %1148 = vmatpush2.msra.mxu0 0.0
    %1149 = vmatprep.subr.mxu0 0.0
    %1150 = vmatpush2.msra.mxu0 0.0
    %1151 = vmatprep.mubr.f32.mxu0 0.0
    %1152 = vmatmul.mubr.f32.gmra.mxu0 %v1014
    %v1153 = vpop.f32.mrf.mxu0
    %v1154 = vadd.f32 0.0, %v1153
    %v1155 = vpop.f32.mrf.mxu0
    %1156 = vdwg.mxu0
    %v1158 = vrot.slane %v1083, 2
    %v1160 = vadd.f32 %v271, %v1158
    %v1161 = vxor.u32 %v1160, 2147483648
    %v1162 = vmul.f32 %v1161, 1.442695
    %v1163 = vpow.pop %v1162
    %v1164 = vadd.f32 %v1163, 1.0
    %v1165 = vrcp.pop %v1164
    %v1166 = vmul.f32 1.0, %v1165
    %v1168 = vrot.slane %v1085, 2
    %v1170 = vadd.f32 %v273, %v1168
    %v1171 = vxor.u32 %v1170, 2147483648
    %v1172 = vmul.f32 %v1171, 1.442695
    %v1173 = vpow.pop %v1172
    %v1174 = vadd.f32 %v1173, 1.0
    %v1175 = vrcp.pop %v1174
    %v1176 = vmul.f32 1.0, %v1175
    %v1177 = vadd.f32 %v1154, %v409
    %v1179 = vrot.slane %v1177, 2
    %v1181 = vmul.f32 %v1166, %v1179
    %v1182 = vadd.f32 %v348, %v1181
    %v1183 = vtanh.pop %v1182
    %v1185 = vrot.slane %v1183, 2
    %v1187 = vsub.f32 %v985, %v1185
    %v1189 = vrot.slane %v1187, 6
    %v1191 = vmul.f32 %v1176, %v1189
    %v1192 = vadd.f32 %v1183, %v1191
    %v1194 = vcombine.high %v1192, %v1192
    %v1196 = vunpack.c.l.s4 1966171168
    %v1197 = vunpack.c.0.s8 %v1196
    %v1198 = vlaneseq
    %v1199 = vshrl.u32 %v1198, 7
    %v1200 = vsub.s32 %v1197, %v1199
    %v1201 = vrot.slane %v1194, %v1200
    %v1202 = vcombine.high %v1201, %v1201
    %v1204 = vunpack.c.l.s4 1966171168
    %v1205 = vunpack.c.0.s8 %v1204
    %v1206 = vlaneseq
    %v1207 = vshrl.u32 %v1206, 7
    %v1208 = vsub.s32 %v1205, %v1207
    %v1209 = vrot.slane %v1201, %v1208
    %v1211 = vunpack.c.l.s4 1966171168
    %v1212 = vunpack.c.0.s8 %v1211
    %v1213 = vlaneseq
    %v1214 = vshrl.u32 %v1213, 7
    %v1215 = vsub.s32 %v1212, %v1214
    %v1216 = vrot.slane %v1202, %v1215
    %v1217 = vcombine.high %v1209, %v1209
    %v1218 = vcombine.high %v1216, %v1216
    %1221 = vst.msk [vmem:[#allocation8 + $0x3] sm:$0x1] %vm598, %v1217
    %1222 = vst.msk [vmem:[#allocation8 + $0xb] sm:$0x1] %vm598, %v1218
    %v1223 = vrot.slane %v1192, 6
    %1225 = vmatprep.subr.mxu0 %v402
    %1226 = vmatpush1.msra.mxu0 %v401
    %1227 = vmatprep.subr.mxu0 %v399
    %1228 = vmatpush1.msra.mxu0 %v398
    %1229 = vmatprep.subr.mxu0 %v396
    %1230 = vmatpush1.msra.mxu0 %v395
    %1231 = vmatprep.subr.mxu0 %v393
    %1232 = vmatpush1.msra.mxu0 %v392
    %1233 = vmatprep.subr.mxu0 %v390
    %1234 = vmatpush1.msra.mxu0 %v389
    %1235 = vmatprep.subr.mxu0 %v387
    %1236 = vmatpush1.msra.mxu0 %v386
    %1237 = vmatprep.subr.mxu0 %v384
    %1238 = vmatpush1.msra.mxu0 %v383
    %1239 = vmatprep.subr.mxu0 %v381
    %1240 = vmatpush1.msra.mxu0 %v380
    %1241 = vmatprep.subr.mxu0 %v378
    %1242 = vmatpush1.msra.mxu0 %v377
    %1243 = vmatprep.subr.mxu0 %v375
    %1244 = vmatpush1.msra.mxu0 %v374
    %1245 = vmatprep.subr.mxu0 %v372
    %1246 = vmatpush1.msra.mxu0 %v371
    %1247 = vmatprep.subr.mxu0 %v369
    %1248 = vmatpush1.msra.mxu0 %v368
    %1249 = vmatprep.subr.mxu0 %v366
    %1250 = vmatpush1.msra.mxu0 %v365
    %1251 = vmatprep.subr.mxu0 %v363
    %1252 = vmatpush1.msra.mxu0 %v362
    %1253 = vmatprep.subr.mxu0 %v360
    %1254 = vmatpush1.msra.mxu0 %v359
    %1255 = vmatprep.subr.mxu0 %v357
    %1256 = vmatpush1.msra.mxu0 %v356
    %1257 = vmatprep.subr.mxu0 0.0
    %1258 = vmatpush2.msra.mxu0 0.0
    %1259 = vmatprep.subr.mxu0 0.0
    %1260 = vmatpush2.msra.mxu0 0.0
    %1261 = vmatprep.subr.mxu0 0.0
    %1262 = vmatpush2.msra.mxu0 0.0
    %1263 = vmatprep.subr.mxu0 0.0
    %1264 = vmatpush2.msra.mxu0 0.0
    %1265 = vmatprep.subr.mxu0 0.0
    %1266 = vmatpush2.msra.mxu0 0.0
    %1267 = vmatprep.subr.mxu0 0.0
    %1268 = vmatpush2.msra.mxu0 0.0
    %1269 = vmatprep.subr.mxu0 0.0
    %1270 = vmatpush2.msra.mxu0 0.0
    %1271 = vmatprep.subr.mxu0 0.0
    %1272 = vmatpush2.msra.mxu0 0.0
    %1273 = vmatprep.subr.mxu0 0.0
    %1274 = vmatpush2.msra.mxu0 0.0
    %1275 = vmatprep.subr.mxu0 0.0
    %1276 = vmatpush2.msra.mxu0 0.0
    %1277 = vmatprep.subr.mxu0 0.0
    %1278 = vmatpush2.msra.mxu0 0.0
    %1279 = vmatprep.subr.mxu0 0.0
    %1280 = vmatpush2.msra.mxu0 0.0
    %1281 = vmatprep.subr.mxu0 0.0
    %1282 = vmatpush2.msra.mxu0 0.0
    %1283 = vmatprep.subr.mxu0 0.0
    %1284 = vmatpush2.msra.mxu0 0.0
    %1285 = vmatprep.subr.mxu0 0.0
    %1286 = vmatpush2.msra.mxu0 0.0
    %1287 = vmatprep.subr.mxu0 0.0
    %1288 = vmatpush2.msra.mxu0 0.0
    %1289 = vmatprep.mubr.f32.mxu0 0.0
    %1290 = vmatmul.mubr.f32.gmra.mxu0 %v1223
    %v1291 = vpop.f32.mrf.mxu0
    %v1292 = vadd.f32 0.0, %v1291
    %v1293 = vpop.f32.mrf.mxu0
    %v1294 = vadd.f32 0.0, %v1293
    %1295 = vdwg.mxu0
    %1296 = vmatprep.subr.mxu0 0.0
    %1297 = vmatpush1.msra.mxu0 %v403
    %1298 = vmatprep.subr.mxu0 0.0
    %1299 = vmatpush1.msra.mxu0 %v400
    %1300 = vmatprep.subr.mxu0 0.0
    %1301 = vmatpush1.msra.mxu0 %v397
    %1302 = vmatprep.subr.mxu0 0.0
    %1303 = vmatpush1.msra.mxu0 %v394
    %1304 = vmatprep.subr.mxu0 0.0
    %1305 = vmatpush1.msra.mxu0 %v391
    %1306 = vmatprep.subr.mxu0 0.0
    %1307 = vmatpush1.msra.mxu0 %v388
    %1308 = vmatprep.subr.mxu0 0.0
    %1309 = vmatpush1.msra.mxu0 %v385
    %1310 = vmatprep.subr.mxu0 0.0
    %1311 = vmatpush1.msra.mxu0 %v382
    %1312 = vmatprep.subr.mxu0 0.0
    %1313 = vmatpush1.msra.mxu0 %v379
    %1314 = vmatprep.subr.mxu0 0.0
    %1315 = vmatpush1.msra.mxu0 %v376
    %1316 = vmatprep.subr.mxu0 0.0
    %1317 = vmatpush1.msra.mxu0 %v373
    %1318 = vmatprep.subr.mxu0 0.0
    %1319 = vmatpush1.msra.mxu0 %v370
    %1320 = vmatprep.subr.mxu0 0.0
    %1321 = vmatpush1.msra.mxu0 %v367
    %1322 = vmatprep.subr.mxu0 0.0
    %1323 = vmatpush1.msra.mxu0 %v364
    %1324 = vmatprep.subr.mxu0 0.0
    %1325 = vmatpush1.msra.mxu0 %v361
    %1326 = vmatprep.subr.mxu0 0.0
    %1327 = vmatpush1.msra.mxu0 %v358
    %1328 = vmatprep.subr.mxu0 0.0
    %1329 = vmatpush2.msra.mxu0 0.0
    %1330 = vmatprep.subr.mxu0 0.0
    %1331 = vmatpush2.msra.mxu0 0.0
    %1332 = vmatprep.subr.mxu0 0.0
    %1333 = vmatpush2.msra.mxu0 0.0
    %1334 = vmatprep.subr.mxu0 0.0
    %1335 = vmatpush2.msra.mxu0 0.0
    %1336 = vmatprep.subr.mxu0 0.0
    %1337 = vmatpush2.msra.mxu0 0.0
    %1338 = vmatprep.subr.mxu0 0.0
    %1339 = vmatpush2.msra.mxu0 0.0
    %1340 = vmatprep.subr.mxu0 0.0
    %1341 = vmatpush2.msra.mxu0 0.0
    %1342 = vmatprep.subr.mxu0 0.0
    %1343 = vmatpush2.msra.mxu0 0.0
    %1344 = vmatprep.subr.mxu0 0.0
    %1345 = vmatpush2.msra.mxu0 0.0
    %1346 = vmatprep.subr.mxu0 0.0
    %1347 = vmatpush2.msra.mxu0 0.0
    %1348 = vmatprep.subr.mxu0 0.0
    %1349 = vmatpush2.msra.mxu0 0.0
    %1350 = vmatprep.subr.mxu0 0.0
    %1351 = vmatpush2.msra.mxu0 0.0
    %1352 = vmatprep.subr.mxu0 0.0
    %1353 = vmatpush2.msra.mxu0 0.0
    %1354 = vmatprep.subr.mxu0 0.0
    %1355 = vmatpush2.msra.mxu0 0.0
    %1356 = vmatprep.subr.mxu0 0.0
    %1357 = vmatpush2.msra.mxu0 0.0
    %1358 = vmatprep.subr.mxu0 0.0
    %1359 = vmatpush2.msra.mxu0 0.0
    %1360 = vmatprep.mubr.f32.mxu0 0.0
    %1361 = vmatmul.mubr.f32.gmra.mxu0 %v1223
    %v1362 = vpop.f32.mrf.mxu0
    %v1363 = vadd.f32 0.0, %v1362
    %v1364 = vpop.f32.mrf.mxu0
    %1365 = vdwg.mxu0
    %v1366 = vadd.f32 %v277, %v1292
    %v1367 = vxor.u32 %v1366, 2147483648
    %v1368 = vmul.f32 %v1367, 1.442695
    %v1369 = vpow.pop %v1368
    %v1370 = vadd.f32 %v1369, 1.0
    %v1371 = vrcp.pop %v1370
    %v1372 = vmul.f32 1.0, %v1371
    %v1373 = vadd.f32 %v279, %v1294
    %v1374 = vxor.u32 %v1373, 2147483648
    %v1375 = vmul.f32 %v1374, 1.442695
    %v1376 = vpow.pop %v1375
    %v1377 = vadd.f32 %v1376, 1.0
    %v1378 = vrcp.pop %v1377
    %v1379 = vmul.f32 1.0, %v1378
    %v1380 = vadd.f32 %v1363, %v409
    %v1381 = vmul.f32 %v1372, %v1380
    %v1382 = vadd.f32 %v353, %v1381
    %v1383 = vtanh.pop %v1382
    %v1385 = vrot.slane %v1383, 2
    %v1387 = vsub.f32 %v1192, %v1385
    %v1389 = vrot.slane %v1387, 6
    %v1391 = vmul.f32 %v1379, %v1389
    %v1392 = vadd.f32 %v1383, %v1391
    %v1395 = vunpack.c.l.s4 1966171168
    %v1396 = vunpack.c.0.s8 %v1395
    %v1397 = vlaneseq
    %v1398 = vshrl.u32 %v1397, 7
    %v1399 = vsub.s32 %v1396, %v1398
    %v1400 = vrot.slane %v1392, %v1399
    %v1401 = vcombine.high %v1400, %v1400
    %v1403 = vunpack.c.l.s4 1966171168
    %v1404 = vunpack.c.0.s8 %v1403
    %v1405 = vlaneseq
    %v1406 = vshrl.u32 %v1405, 7
    %v1407 = vsub.s32 %v1404, %v1406
    %v1408 = vrot.slane %v1400, %v1407
    %v1410 = vunpack.c.l.s4 1966171168
    %v1411 = vunpack.c.0.s8 %v1410
    %v1412 = vlaneseq
    %v1413 = vshrl.u32 %v1412, 7
    %v1414 = vsub.s32 %v1411, %v1413
    %v1415 = vrot.slane %v1401, %v1414
    %1418 = vst.msk [vmem:[#allocation8 + $0x4] sm:$0x1] %vm598, %v1408
    %1419 = vst.msk [vmem:[#allocation8 + $0xc] sm:$0x1] %vm598, %v1415
    %1420 = vmatprep.subr.mxu0 %v402
    %1421 = vmatpush1.msra.mxu0 %v401
    %1422 = vmatprep.subr.mxu0 %v399
    %1423 = vmatpush1.msra.mxu0 %v398
    %1424 = vmatprep.subr.mxu0 %v396
    %1425 = vmatpush1.msra.mxu0 %v395
    %1426 = vmatprep.subr.mxu0 %v393
    %1427 = vmatpush1.msra.mxu0 %v392
    %1428 = vmatprep.subr.mxu0 %v390
    %1429 = vmatpush1.msra.mxu0 %v389
    %1430 = vmatprep.subr.mxu0 %v387
    %1431 = vmatpush1.msra.mxu0 %v386
    %1432 = vmatprep.subr.mxu0 %v384
    %1433 = vmatpush1.msra.mxu0 %v383
    %1434 = vmatprep.subr.mxu0 %v381
    %1435 = vmatpush1.msra.mxu0 %v380
    %1436 = vmatprep.subr.mxu0 %v378
    %1437 = vmatpush1.msra.mxu0 %v377
    %1438 = vmatprep.subr.mxu0 %v375
    %1439 = vmatpush1.msra.mxu0 %v374
    %1440 = vmatprep.subr.mxu0 %v372
    %1441 = vmatpush1.msra.mxu0 %v371
    %1442 = vmatprep.subr.mxu0 %v369
    %1443 = vmatpush1.msra.mxu0 %v368
    %1444 = vmatprep.subr.mxu0 %v366
    %1445 = vmatpush1.msra.mxu0 %v365
    %1446 = vmatprep.subr.mxu0 %v363
    %1447 = vmatpush1.msra.mxu0 %v362
    %1448 = vmatprep.subr.mxu0 %v360
    %1449 = vmatpush1.msra.mxu0 %v359
    %1450 = vmatprep.subr.mxu0 %v357
    %1451 = vmatpush1.msra.mxu0 %v356
    %1452 = vmatprep.subr.mxu0 0.0
    %1453 = vmatpush2.msra.mxu0 0.0
    %1454 = vmatprep.subr.mxu0 0.0
    %1455 = vmatpush2.msra.mxu0 0.0
    %1456 = vmatprep.subr.mxu0 0.0
    %1457 = vmatpush2.msra.mxu0 0.0
    %1458 = vmatprep.subr.mxu0 0.0
    %1459 = vmatpush2.msra.mxu0 0.0
    %1460 = vmatprep.subr.mxu0 0.0
    %1461 = vmatpush2.msra.mxu0 0.0
    %1462 = vmatprep.subr.mxu0 0.0
    %1463 = vmatpush2.msra.mxu0 0.0
    %1464 = vmatprep.subr.mxu0 0.0
    %1465 = vmatpush2.msra.mxu0 0.0
    %1466 = vmatprep.subr.mxu0 0.0
    %1467 = vmatpush2.msra.mxu0 0.0
    %1468 = vmatprep.subr.mxu0 0.0
    %1469 = vmatpush2.msra.mxu0 0.0
    %1470 = vmatprep.subr.mxu0 0.0
    %1471 = vmatpush2.msra.mxu0 0.0
    %1472 = vmatprep.subr.mxu0 0.0
    %1473 = vmatpush2.msra.mxu0 0.0
    %1474 = vmatprep.subr.mxu0 0.0
    %1475 = vmatpush2.msra.mxu0 0.0
    %1476 = vmatprep.subr.mxu0 0.0
    %1477 = vmatpush2.msra.mxu0 0.0
    %1478 = vmatprep.subr.mxu0 0.0
    %1479 = vmatpush2.msra.mxu0 0.0
    %1480 = vmatprep.subr.mxu0 0.0
    %1481 = vmatpush2.msra.mxu0 0.0
    %1482 = vmatprep.subr.mxu0 0.0
    %1483 = vmatpush2.msra.mxu0 0.0
    %1484 = vmatprep.mubr.f32.mxu0 0.0
    %1485 = vmatmul.mubr.f32.gmra.mxu0 %v1392
    %v1486 = vpop.f32.mrf.mxu0
    %v1487 = vadd.f32 0.0, %v1486
    %v1488 = vpop.f32.mrf.mxu0
    %v1489 = vadd.f32 0.0, %v1488
    %1490 = vdwg.mxu0
    %1491 = vmatprep.subr.mxu0 0.0
    %1492 = vmatpush1.msra.mxu0 %v403
    %1493 = vmatprep.subr.mxu0 0.0
    %1494 = vmatpush1.msra.mxu0 %v400
    %1495 = vmatprep.subr.mxu0 0.0
    %1496 = vmatpush1.msra.mxu0 %v397
    %1497 = vmatprep.subr.mxu0 0.0
    %1498 = vmatpush1.msra.mxu0 %v394
    %1499 = vmatprep.subr.mxu0 0.0
    %1500 = vmatpush1.msra.mxu0 %v391
    %1501 = vmatprep.subr.mxu0 0.0
    %1502 = vmatpush1.msra.mxu0 %v388
    %1503 = vmatprep.subr.mxu0 0.0
    %1504 = vmatpush1.msra.mxu0 %v385
    %1505 = vmatprep.subr.mxu0 0.0
    %1506 = vmatpush1.msra.mxu0 %v382
    %1507 = vmatprep.subr.mxu0 0.0
    %1508 = vmatpush1.msra.mxu0 %v379
    %1509 = vmatprep.subr.mxu0 0.0
    %1510 = vmatpush1.msra.mxu0 %v376
    %1511 = vmatprep.subr.mxu0 0.0
    %1512 = vmatpush1.msra.mxu0 %v373
    %1513 = vmatprep.subr.mxu0 0.0
    %1514 = vmatpush1.msra.mxu0 %v370
    %1515 = vmatprep.subr.mxu0 0.0
    %1516 = vmatpush1.msra.mxu0 %v367
    %1517 = vmatprep.subr.mxu0 0.0
    %1518 = vmatpush1.msra.mxu0 %v364
    %1519 = vmatprep.subr.mxu0 0.0
    %1520 = vmatpush1.msra.mxu0 %v361
    %1521 = vmatprep.subr.mxu0 0.0
    %1522 = vmatpush1.msra.mxu0 %v358
    %1523 = vmatprep.subr.mxu0 0.0
    %1524 = vmatpush2.msra.mxu0 0.0
    %1525 = vmatprep.subr.mxu0 0.0
    %1526 = vmatpush2.msra.mxu0 0.0
    %1527 = vmatprep.subr.mxu0 0.0
    %1528 = vmatpush2.msra.mxu0 0.0
    %1529 = vmatprep.subr.mxu0 0.0
    %1530 = vmatpush2.msra.mxu0 0.0
    %1531 = vmatprep.subr.mxu0 0.0
    %1532 = vmatpush2.msra.mxu0 0.0
    %1533 = vmatprep.subr.mxu0 0.0
    %1534 = vmatpush2.msra.mxu0 0.0
    %1535 = vmatprep.subr.mxu0 0.0
    %1536 = vmatpush2.msra.mxu0 0.0
    %1537 = vmatprep.subr.mxu0 0.0
    %1538 = vmatpush2.msra.mxu0 0.0
    %1539 = vmatprep.subr.mxu0 0.0
    %1540 = vmatpush2.msra.mxu0 0.0
    %1541 = vmatprep.subr.mxu0 0.0
    %1542 = vmatpush2.msra.mxu0 0.0
    %1543 = vmatprep.subr.mxu0 0.0
    %1544 = vmatpush2.msra.mxu0 0.0
    %1545 = vmatprep.subr.mxu0 0.0
    %1546 = vmatpush2.msra.mxu0 0.0
    %1547 = vmatprep.subr.mxu0 0.0
    %1548 = vmatpush2.msra.mxu0 0.0
    %1549 = vmatprep.subr.mxu0 0.0
    %1550 = vmatpush2.msra.mxu0 0.0
    %1551 = vmatprep.subr.mxu0 0.0
    %1552 = vmatpush2.msra.mxu0 0.0
    %1553 = vmatprep.subr.mxu0 0.0
    %1554 = vmatpush2.msra.mxu0 0.0
    %1555 = vmatprep.mubr.f32.mxu0 0.0
    %1556 = vmatmul.mubr.f32.gmra.mxu0 %v1392
    %v1557 = vpop.f32.mrf.mxu0
    %v1558 = vadd.f32 0.0, %v1557
    %v1559 = vpop.f32.mrf.mxu0
    %1560 = vdwg.mxu0
    %v1562 = vrot.slane %v1487, 6
    %v1564 = vadd.f32 %v277, %v1562
    %v1565 = vxor.u32 %v1564, 2147483648
    %v1566 = vmul.f32 %v1565, 1.442695
    %v1567 = vpow.pop %v1566
    %v1568 = vadd.f32 %v1567, 1.0
    %v1569 = vrcp.pop %v1568
    %v1570 = vmul.f32 1.0, %v1569
    %v1572 = vrot.slane %v1489, 6
    %v1574 = vadd.f32 %v279, %v1572
    %v1575 = vxor.u32 %v1574, 2147483648
    %v1576 = vmul.f32 %v1575, 1.442695
    %v1577 = vpow.pop %v1576
    %v1578 = vadd.f32 %v1577, 1.0
    %v1579 = vrcp.pop %v1578
    %v1580 = vmul.f32 1.0, %v1579
    %v1581 = vadd.f32 %v1558, %v409
    %v1583 = vrot.slane %v1581, 6
    %v1585 = vmul.f32 %v1570, %v1583
    %v1586 = vadd.f32 %v353, %v1585
    %v1587 = vtanh.pop %v1586
    %v1589 = vrot.slane %v1587, 2
    %v1591 = vsub.f32 %v1392, %v1589
    %v1593 = vrot.slane %v1591, 6
    %v1595 = vmul.f32 %v1580, %v1593
    %v1596 = vadd.f32 %v1587, %v1595
    %v1599 = vunpack.c.l.s4 1966171168
    %v1600 = vunpack.c.0.s8 %v1599
    %v1601 = vlaneseq
    %v1602 = vshrl.u32 %v1601, 7
    %v1603 = vsub.s32 %v1600, %v1602
    %v1604 = vrot.slane %v1596, %v1603
    %v1605 = vcombine.high %v1604, %v1604
    %v1607 = vunpack.c.l.s4 1966171168
    %v1608 = vunpack.c.0.s8 %v1607
    %v1609 = vlaneseq
    %v1610 = vshrl.u32 %v1609, 7
    %v1611 = vsub.s32 %v1608, %v1610
    %v1612 = vrot.slane %v1604, %v1611
    %v1614 = vunpack.c.l.s4 1966171168
    %v1615 = vunpack.c.0.s8 %v1614
    %v1616 = vlaneseq
    %v1617 = vshrl.u32 %v1616, 7
    %v1618 = vsub.s32 %v1615, %v1617
    %v1619 = vrot.slane %v1605, %v1618
    %v1620 = vcombine.high %v1612, %v1612
    %v1621 = vcombine.high %v1619, %v1619
    %1624 = vst.msk [vmem:[#allocation8 + $0x5] sm:$0x1] %vm598, %v1620
    %1625 = vst.msk [vmem:[#allocation8 + $0xd] sm:$0x1] %vm598, %v1621
    %v1626 = vrot.slane %v1596, 2
    %1628 = vmatprep.subr.mxu0 %v402
    %1629 = vmatpush1.msra.mxu0 %v401
    %1630 = vmatprep.subr.mxu0 %v399
    %1631 = vmatpush1.msra.mxu0 %v398
    %1632 = vmatprep.subr.mxu0 %v396
    %1633 = vmatpush1.msra.mxu0 %v395
    %1634 = vmatprep.subr.mxu0 %v393
    %1635 = vmatpush1.msra.mxu0 %v392
    %1636 = vmatprep.subr.mxu0 %v390
    %1637 = vmatpush1.msra.mxu0 %v389
    %1638 = vmatprep.subr.mxu0 %v387
    %1639 = vmatpush1.msra.mxu0 %v386
    %1640 = vmatprep.subr.mxu0 %v384
    %1641 = vmatpush1.msra.mxu0 %v383
    %1642 = vmatprep.subr.mxu0 %v381
    %1643 = vmatpush1.msra.mxu0 %v380
    %1644 = vmatprep.subr.mxu0 %v378
    %1645 = vmatpush1.msra.mxu0 %v377
    %1646 = vmatprep.subr.mxu0 %v375
    %1647 = vmatpush1.msra.mxu0 %v374
    %1648 = vmatprep.subr.mxu0 %v372
    %1649 = vmatpush1.msra.mxu0 %v371
    %1650 = vmatprep.subr.mxu0 %v369
    %1651 = vmatpush1.msra.mxu0 %v368
    %1652 = vmatprep.subr.mxu0 %v366
    %1653 = vmatpush1.msra.mxu0 %v365
    %1654 = vmatprep.subr.mxu0 %v363
    %1655 = vmatpush1.msra.mxu0 %v362
    %1656 = vmatprep.subr.mxu0 %v360
    %1657 = vmatpush1.msra.mxu0 %v359
    %1658 = vmatprep.subr.mxu0 %v357
    %1659 = vmatpush1.msra.mxu0 %v356
    %1660 = vmatprep.subr.mxu0 0.0
    %1661 = vmatpush2.msra.mxu0 0.0
    %1662 = vmatprep.subr.mxu0 0.0
    %1663 = vmatpush2.msra.mxu0 0.0
    %1664 = vmatprep.subr.mxu0 0.0
    %1665 = vmatpush2.msra.mxu0 0.0
    %1666 = vmatprep.subr.mxu0 0.0
    %1667 = vmatpush2.msra.mxu0 0.0
    %1668 = vmatprep.subr.mxu0 0.0
    %1669 = vmatpush2.msra.mxu0 0.0
    %1670 = vmatprep.subr.mxu0 0.0
    %1671 = vmatpush2.msra.mxu0 0.0
    %1672 = vmatprep.subr.mxu0 0.0
    %1673 = vmatpush2.msra.mxu0 0.0
    %1674 = vmatprep.subr.mxu0 0.0
    %1675 = vmatpush2.msra.mxu0 0.0
    %1676 = vmatprep.subr.mxu0 0.0
    %1677 = vmatpush2.msra.mxu0 0.0
    %1678 = vmatprep.subr.mxu0 0.0
    %1679 = vmatpush2.msra.mxu0 0.0
    %1680 = vmatprep.subr.mxu0 0.0
    %1681 = vmatpush2.msra.mxu0 0.0
    %1682 = vmatprep.subr.mxu0 0.0
    %1683 = vmatpush2.msra.mxu0 0.0
    %1684 = vmatprep.subr.mxu0 0.0
    %1685 = vmatpush2.msra.mxu0 0.0
    %1686 = vmatprep.subr.mxu0 0.0
    %1687 = vmatpush2.msra.mxu0 0.0
    %1688 = vmatprep.subr.mxu0 0.0
    %1689 = vmatpush2.msra.mxu0 0.0
    %1690 = vmatprep.subr.mxu0 0.0
    %1691 = vmatpush2.msra.mxu0 0.0
    %1692 = vmatprep.mubr.f32.mxu0 0.0
    %1693 = vmatmul.mubr.f32.gmra.mxu0 %v1626
    %v1694 = vpop.f32.mrf.mxu0
    %v1695 = vadd.f32 0.0, %v1694
    %v1696 = vpop.f32.mrf.mxu0
    %v1697 = vadd.f32 0.0, %v1696
    %1698 = vdwg.mxu0
    %1699 = vmatprep.subr.mxu0 0.0
    %1700 = vmatpush1.msra.mxu0 %v403
    %1701 = vmatprep.subr.mxu0 0.0
    %1702 = vmatpush1.msra.mxu0 %v400
    %1703 = vmatprep.subr.mxu0 0.0
    %1704 = vmatpush1.msra.mxu0 %v397
    %1705 = vmatprep.subr.mxu0 0.0
    %1706 = vmatpush1.msra.mxu0 %v394
    %1707 = vmatprep.subr.mxu0 0.0
    %1708 = vmatpush1.msra.mxu0 %v391
    %1709 = vmatprep.subr.mxu0 0.0
    %1710 = vmatpush1.msra.mxu0 %v388
    %1711 = vmatprep.subr.mxu0 0.0
    %1712 = vmatpush1.msra.mxu0 %v385
    %1713 = vmatprep.subr.mxu0 0.0
    %1714 = vmatpush1.msra.mxu0 %v382
    %1715 = vmatprep.subr.mxu0 0.0
    %1716 = vmatpush1.msra.mxu0 %v379
    %1717 = vmatprep.subr.mxu0 0.0
    %1718 = vmatpush1.msra.mxu0 %v376
    %1719 = vmatprep.subr.mxu0 0.0
    %1720 = vmatpush1.msra.mxu0 %v373
    %1721 = vmatprep.subr.mxu0 0.0
    %1722 = vmatpush1.msra.mxu0 %v370
    %1723 = vmatprep.subr.mxu0 0.0
    %1724 = vmatpush1.msra.mxu0 %v367
    %1725 = vmatprep.subr.mxu0 0.0
    %1726 = vmatpush1.msra.mxu0 %v364
    %1727 = vmatprep.subr.mxu0 0.0
    %1728 = vmatpush1.msra.mxu0 %v361
    %1729 = vmatprep.subr.mxu0 0.0
    %1730 = vmatpush1.msra.mxu0 %v358
    %1731 = vmatprep.subr.mxu0 0.0
    %1732 = vmatpush2.msra.mxu0 0.0
    %1733 = vmatprep.subr.mxu0 0.0
    %1734 = vmatpush2.msra.mxu0 0.0
    %1735 = vmatprep.subr.mxu0 0.0
    %1736 = vmatpush2.msra.mxu0 0.0
    %1737 = vmatprep.subr.mxu0 0.0
    %1738 = vmatpush2.msra.mxu0 0.0
    %1739 = vmatprep.subr.mxu0 0.0
    %1740 = vmatpush2.msra.mxu0 0.0
    %1741 = vmatprep.subr.mxu0 0.0
    %1742 = vmatpush2.msra.mxu0 0.0
    %1743 = vmatprep.subr.mxu0 0.0
    %1744 = vmatpush2.msra.mxu0 0.0
    %1745 = vmatprep.subr.mxu0 0.0
    %1746 = vmatpush2.msra.mxu0 0.0
    %1747 = vmatprep.subr.mxu0 0.0
    %1748 = vmatpush2.msra.mxu0 0.0
    %1749 = vmatprep.subr.mxu0 0.0
    %1750 = vmatpush2.msra.mxu0 0.0
    %1751 = vmatprep.subr.mxu0 0.0
    %1752 = vmatpush2.msra.mxu0 0.0
    %1753 = vmatprep.subr.mxu0 0.0
    %1754 = vmatpush2.msra.mxu0 0.0
    %1755 = vmatprep.subr.mxu0 0.0
    %1756 = vmatpush2.msra.mxu0 0.0
    %1757 = vmatprep.subr.mxu0 0.0
    %1758 = vmatpush2.msra.mxu0 0.0
    %1759 = vmatprep.subr.mxu0 0.0
    %1760 = vmatpush2.msra.mxu0 0.0
    %1761 = vmatprep.subr.mxu0 0.0
    %1762 = vmatpush2.msra.mxu0 0.0
    %1763 = vmatprep.mubr.f32.mxu0 0.0
    %1764 = vmatmul.mubr.f32.gmra.mxu0 %v1626
    %v1765 = vpop.f32.mrf.mxu0
    %v1766 = vadd.f32 0.0, %v1765
    %v1767 = vpop.f32.mrf.mxu0
    %1768 = vdwg.mxu0
    %v1770 = vrot.slane %v1695, 4
    %v1772 = vadd.f32 %v277, %v1770
    %v1773 = vxor.u32 %v1772, 2147483648
    %v1774 = vmul.f32 %v1773, 1.442695
    %v1775 = vpow.pop %v1774
    %v1776 = vadd.f32 %v1775, 1.0
    %v1777 = vrcp.pop %v1776
    %v1778 = vmul.f32 1.0, %v1777
    %v1780 = vrot.slane %v1697, 4
    %v1782 = vadd.f32 %v279, %v1780
    %v1783 = vxor.u32 %v1782, 2147483648
    %v1784 = vmul.f32 %v1783, 1.442695
    %v1785 = vpow.pop %v1784
    %v1786 = vadd.f32 %v1785, 1.0
    %v1787 = vrcp.pop %v1786
    %v1788 = vmul.f32 1.0, %v1787
    %v1789 = vadd.f32 %v1766, %v409
    %v1791 = vrot.slane %v1789, 4
    %v1793 = vmul.f32 %v1778, %v1791
    %v1794 = vadd.f32 %v353, %v1793
    %v1795 = vtanh.pop %v1794
    %v1797 = vrot.slane %v1795, 2
    %v1799 = vsub.f32 %v1596, %v1797
    %v1801 = vrot.slane %v1799, 6
    %v1803 = vmul.f32 %v1788, %v1801
    %v1804 = vadd.f32 %v1795, %v1803
    %v1806 = vcombine.high %v1804, %v1804
    %v1808 = vunpack.c.l.s4 1966171168
    %v1809 = vunpack.c.0.s8 %v1808
    %v1810 = vlaneseq
    %v1811 = vshrl.u32 %v1810, 7
    %v1812 = vsub.s32 %v1809, %v1811
    %v1813 = vrot.slane %v1806, %v1812
    %v1814 = vcombine.high %v1813, %v1813
    %v1816 = vunpack.c.l.s4 1966171168
    %v1817 = vunpack.c.0.s8 %v1816
    %v1818 = vlaneseq
    %v1819 = vshrl.u32 %v1818, 7
    %v1820 = vsub.s32 %v1817, %v1819
    %v1821 = vrot.slane %v1813, %v1820
    %v1823 = vunpack.c.l.s4 1966171168
    %v1824 = vunpack.c.0.s8 %v1823
    %v1825 = vlaneseq
    %v1826 = vshrl.u32 %v1825, 7
    %v1827 = vsub.s32 %v1824, %v1826
    %v1828 = vrot.slane %v1814, %v1827
    %1831 = vst.msk [vmem:[#allocation8 + $0x6] sm:$0x1] %vm598, %v1821
    %1832 = vst.msk [vmem:[#allocation8 + $0xe] sm:$0x1] %vm598, %v1828
    %v1833 = vrot.slane %v1804, 4
    %1835 = vmatprep.subr.mxu0 %v402
    %1836 = vmatpush1.msra.mxu0 %v401
    %1837 = vmatprep.subr.mxu0 %v399
    %1838 = vmatpush1.msra.mxu0 %v398
    %1839 = vmatprep.subr.mxu0 %v396
    %1840 = vmatpush1.msra.mxu0 %v395
    %1841 = vmatprep.subr.mxu0 %v393
    %1842 = vmatpush1.msra.mxu0 %v392
    %1843 = vmatprep.subr.mxu0 %v390
    %1844 = vmatpush1.msra.mxu0 %v389
    %1845 = vmatprep.subr.mxu0 %v387
    %1846 = vmatpush1.msra.mxu0 %v386
    %1847 = vmatprep.subr.mxu0 %v384
    %1848 = vmatpush1.msra.mxu0 %v383
    %1849 = vmatprep.subr.mxu0 %v381
    %1850 = vmatpush1.msra.mxu0 %v380
    %1851 = vmatprep.subr.mxu0 %v378
    %1852 = vmatpush1.msra.mxu0 %v377
    %1853 = vmatprep.subr.mxu0 %v375
    %1854 = vmatpush1.msra.mxu0 %v374
    %1855 = vmatprep.subr.mxu0 %v372
    %1856 = vmatpush1.msra.mxu0 %v371
    %1857 = vmatprep.subr.mxu0 %v369
    %1858 = vmatpush1.msra.mxu0 %v368
    %1859 = vmatprep.subr.mxu0 %v366
    %1860 = vmatpush1.msra.mxu0 %v365
    %1861 = vmatprep.subr.mxu0 %v363
    %1862 = vmatpush1.msra.mxu0 %v362
    %1863 = vmatprep.subr.mxu0 %v360
    %1864 = vmatpush1.msra.mxu0 %v359
    %1865 = vmatprep.subr.mxu0 %v357
    %1866 = vmatpush1.msra.mxu0 %v356
    %1867 = vmatprep.subr.mxu0 0.0
    %1868 = vmatpush2.msra.mxu0 0.0
    %1869 = vmatprep.subr.mxu0 0.0
    %1870 = vmatpush2.msra.mxu0 0.0
    %1871 = vmatprep.subr.mxu0 0.0
    %1872 = vmatpush2.msra.mxu0 0.0
    %1873 = vmatprep.subr.mxu0 0.0
    %1874 = vmatpush2.msra.mxu0 0.0
    %1875 = vmatprep.subr.mxu0 0.0
    %1876 = vmatpush2.msra.mxu0 0.0
    %1877 = vmatprep.subr.mxu0 0.0
    %1878 = vmatpush2.msra.mxu0 0.0
    %1879 = vmatprep.subr.mxu0 0.0
    %1880 = vmatpush2.msra.mxu0 0.0
    %1881 = vmatprep.subr.mxu0 0.0
    %1882 = vmatpush2.msra.mxu0 0.0
    %1883 = vmatprep.subr.mxu0 0.0
    %1884 = vmatpush2.msra.mxu0 0.0
    %1885 = vmatprep.subr.mxu0 0.0
    %1886 = vmatpush2.msra.mxu0 0.0
    %1887 = vmatprep.subr.mxu0 0.0
    %1888 = vmatpush2.msra.mxu0 0.0
    %1889 = vmatprep.subr.mxu0 0.0
    %1890 = vmatpush2.msra.mxu0 0.0
    %1891 = vmatprep.subr.mxu0 0.0
    %1892 = vmatpush2.msra.mxu0 0.0
    %1893 = vmatprep.subr.mxu0 0.0
    %1894 = vmatpush2.msra.mxu0 0.0
    %1895 = vmatprep.subr.mxu0 0.0
    %1896 = vmatpush2.msra.mxu0 0.0
    %1897 = vmatprep.subr.mxu0 0.0
    %1898 = vmatpush2.msra.mxu0 0.0
    %1899 = vmatprep.mubr.f32.mxu0 0.0
    %1900 = vmatmul.mubr.f32.gmra.mxu0 %v1833
    %v1901 = vpop.f32.mrf.mxu0
    %v1902 = vadd.f32 0.0, %v1901
    %v1903 = vpop.f32.mrf.mxu0
    %v1904 = vadd.f32 0.0, %v1903
    %1905 = vdwg.mxu0
    %1906 = vmatprep.subr.mxu0 0.0
    %1907 = vmatpush1.msra.mxu0 %v403
    %1908 = vmatprep.subr.mxu0 0.0
    %1909 = vmatpush1.msra.mxu0 %v400
    %1910 = vmatprep.subr.mxu0 0.0
    %1911 = vmatpush1.msra.mxu0 %v397
    %1912 = vmatprep.subr.mxu0 0.0
    %1913 = vmatpush1.msra.mxu0 %v394
    %1914 = vmatprep.subr.mxu0 0.0
    %1915 = vmatpush1.msra.mxu0 %v391
    %1916 = vmatprep.subr.mxu0 0.0
    %1917 = vmatpush1.msra.mxu0 %v388
    %1918 = vmatprep.subr.mxu0 0.0
    %1919 = vmatpush1.msra.mxu0 %v385
    %1920 = vmatprep.subr.mxu0 0.0
    %1921 = vmatpush1.msra.mxu0 %v382
    %1922 = vmatprep.subr.mxu0 0.0
    %1923 = vmatpush1.msra.mxu0 %v379
    %1924 = vmatprep.subr.mxu0 0.0
    %1925 = vmatpush1.msra.mxu0 %v376
    %1926 = vmatprep.subr.mxu0 0.0
    %1927 = vmatpush1.msra.mxu0 %v373
    %1928 = vmatprep.subr.mxu0 0.0
    %1929 = vmatpush1.msra.mxu0 %v370
    %1930 = vmatprep.subr.mxu0 0.0
    %1931 = vmatpush1.msra.mxu0 %v367
    %1932 = vmatprep.subr.mxu0 0.0
    %1933 = vmatpush1.msra.mxu0 %v364
    %1934 = vmatprep.subr.mxu0 0.0
    %1935 = vmatpush1.msra.mxu0 %v361
    %1936 = vmatprep.subr.mxu0 0.0
    %1937 = vmatpush1.msra.mxu0 %v358
    %1938 = vmatprep.subr.mxu0 0.0
    %1939 = vmatpush2.msra.mxu0 0.0
    %1940 = vmatprep.subr.mxu0 0.0
    %1941 = vmatpush2.msra.mxu0 0.0
    %1942 = vmatprep.subr.mxu0 0.0
    %1943 = vmatpush2.msra.mxu0 0.0
    %1944 = vmatprep.subr.mxu0 0.0
    %1945 = vmatpush2.msra.mxu0 0.0
    %1946 = vmatprep.subr.mxu0 0.0
    %1947 = vmatpush2.msra.mxu0 0.0
    %1948 = vmatprep.subr.mxu0 0.0
    %1949 = vmatpush2.msra.mxu0 0.0
    %1950 = vmatprep.subr.mxu0 0.0
    %1951 = vmatpush2.msra.mxu0 0.0
    %1952 = vmatprep.subr.mxu0 0.0
    %1953 = vmatpush2.msra.mxu0 0.0
    %1954 = vmatprep.subr.mxu0 0.0
    %1955 = vmatpush2.msra.mxu0 0.0
    %1956 = vmatprep.subr.mxu0 0.0
    %1957 = vmatpush2.msra.mxu0 0.0
    %1958 = vmatprep.subr.mxu0 0.0
    %1959 = vmatpush2.msra.mxu0 0.0
    %1960 = vmatprep.subr.mxu0 0.0
    %1961 = vmatpush2.msra.mxu0 0.0
    %1962 = vmatprep.subr.mxu0 0.0
    %1963 = vmatpush2.msra.mxu0 0.0
    %1964 = vmatprep.subr.mxu0 0.0
    %1965 = vmatpush2.msra.mxu0 0.0
    %1966 = vmatprep.subr.mxu0 0.0
    %1967 = vmatpush2.msra.mxu0 0.0
    %1968 = vmatprep.subr.mxu0 0.0
    %1969 = vmatpush2.msra.mxu0 0.0
    %1970 = vmatprep.mubr.f32.mxu0 0.0
    %1971 = vmatmul.mubr.f32.gmra.mxu0 %v1833
    %v1972 = vpop.f32.mrf.mxu0
    %v1973 = vadd.f32 0.0, %v1972
    %v1974 = vpop.f32.mrf.mxu0
    %1975 = vdwg.mxu0
    %v1977 = vrot.slane %v1902, 2
    %v1979 = vadd.f32 %v277, %v1977
    %v1980 = vxor.u32 %v1979, 2147483648
    %v1981 = vmul.f32 %v1980, 1.442695
    %v1982 = vpow.pop %v1981
    %v1983 = vadd.f32 %v1982, 1.0
    %v1984 = vrcp.pop %v1983
    %v1985 = vmul.f32 1.0, %v1984
    %v1987 = vrot.slane %v1904, 2
    %v1989 = vadd.f32 %v279, %v1987
    %v1990 = vxor.u32 %v1989, 2147483648
    %v1991 = vmul.f32 %v1990, 1.442695
    %v1992 = vpow.pop %v1991
    %v1993 = vadd.f32 %v1992, 1.0
    %v1994 = vrcp.pop %v1993
    %v1995 = vmul.f32 1.0, %v1994
    %v1996 = vadd.f32 %v1973, %v409
    %v1998 = vrot.slane %v1996, 2
    %v2000 = vmul.f32 %v1985, %v1998
    %v2001 = vadd.f32 %v353, %v2000
    %v2002 = vtanh.pop %v2001
    %v2004 = vrot.slane %v2002, 2
    %v2006 = vsub.f32 %v1804, %v2004
    %v2008 = vrot.slane %v2006, 6
    %v2010 = vmul.f32 %v1995, %v2008
    %v2011 = vadd.f32 %v2002, %v2010
    %v2013 = vcombine.high %v2011, %v2011
    %v2015 = vunpack.c.l.s4 1966171168
    %v2016 = vunpack.c.0.s8 %v2015
    %v2017 = vlaneseq
    %v2018 = vshrl.u32 %v2017, 7
    %v2019 = vsub.s32 %v2016, %v2018
    %v2020 = vrot.slane %v2013, %v2019
    %v2021 = vcombine.high %v2020, %v2020
    %v2023 = vunpack.c.l.s4 1966171168
    %v2024 = vunpack.c.0.s8 %v2023
    %v2025 = vlaneseq
    %v2026 = vshrl.u32 %v2025, 7
    %v2027 = vsub.s32 %v2024, %v2026
    %v2028 = vrot.slane %v2020, %v2027
    %v2030 = vunpack.c.l.s4 1966171168
    %v2031 = vunpack.c.0.s8 %v2030
    %v2032 = vlaneseq
    %v2033 = vshrl.u32 %v2032, 7
    %v2034 = vsub.s32 %v2031, %v2033
    %v2035 = vrot.slane %v2021, %v2034
    %v2036 = vcombine.high %v2028, %v2028
    %v2037 = vcombine.high %v2035, %v2035
    %2040 = vst.msk [vmem:[#allocation8 + $0x7] sm:$0x1] %vm598, %v2036
    %2041 = vst.msk [vmem:[#allocation8 + $0xf] sm:$0x1] %vm598, %v2037
    // Predicated region
    $region38: #{tpu_custom_call.1} parent=1 // pred_check
      _
    $region39: #{tpu_custom_call.1} parent=1 // pred_check_branch
      %2043 = sbr.rel (0) target = $region41
    $region40: #{tpu_custom_call.1} parent=1 // pred_region
      %s2045 = ssub.s32 256, 256
      %2046 = vsyncadd [#allocation4], %s2045
      %s2047 = sshll.u32 [#allocation8], 4
      %s2048 = int_to_ptr.vmem [resolvable:$true] %s2047
      %2053 = dma.vmem_to_hbm [thread:$0]  %s2048, 256, %s6, [#allocation4], 128, 128, 8
    $region41: #{tpu_custom_call.1} parent=1 // pred_fallthru
      _
    // Predicated region
    $region42: #{tpu_custom_call.1} parent=1 // pred_check
      _
    $region43: #{tpu_custom_call.1} parent=1 // pred_check_branch
      %2055 = sbr.rel (0) target = $region45
    $region44: #{tpu_custom_call.1} parent=1 // pred_region
      %2056 = dma.done [#allocation4], 256
    $region45: #{tpu_custom_call.1} parent=1 // pred_fallthru
      _
    %2057 = vsyncpa [#allocation3], 1
    %2058 = vsyncpa [#allocation6], 1
    %2059 = vsyncpa [#allocation4], 1

</llo_original>
